<compile_context>
chip_gen: v5e
topology: v5e:2x2
jax: 0.10.0
libtpu: 0.0.40
codegen_flags: <defaults>
</compile_context>

<pallas_src>
import numpy as np
import jax
import jax.numpy as jnp
from jax.experimental import pallas as pl
from jax.experimental.pallas import tpu as pltpu


def _erf(x):
    # Abramowitz & Stegun 7.1.26 rational approximation (|err| < 1.5e-7); matches
    # PyTorch's exact erf-based nn.GELU() to well within the f32 test tolerance.
    a1, a2, a3, a4, a5 = 0.254829592, -0.284496736, 1.421413741, -1.453152027, 1.061405429
    p = 0.3275911
    s = jnp.where(x >= 0.0, 1.0, -1.0)
    ax = jnp.abs(x)
    t = 1.0 / (1.0 + p * ax)
    poly = ((((a5 * t + a4) * t + a3) * t + a2) * t + a1) * t
    return s * (1.0 - poly * jnp.exp(-ax * ax))


def _make_kernel(Cin, Hid, Cout, Wp, Q):
    inv_sqrt2 = float(1.0 / np.sqrt(2.0))
    inv_cin = float(1.0 / Cin)

    def kernel(x_ref, dww_ref, dwb_ref, lng_ref, lnb_ref,
               w1t_ref, b1_ref, grng_ref, grnb_ref,
               w2t_ref, rwt_ref, b2_ref, mask_ref, out_ref):
        xq = x_ref[0]                      # (Cin, Lin)  zero-padded, flattened image
        dww = dww_ref[...]                 # (Cin, 49)   depthwise taps, channel-major

        # ---- depthwise 7x7 conv (groups=Cin), lane-dense, exact f32 on the VPU ----
        # Output position p = y*Wp + x reads flat input position p + ky*Wp + kx.
        acc = xq[:, 0:Q] * dww[:, 0:1]
        for t in range(1, 49):
            ky, kx = divmod(t, 7)
            off = ky * Wp + kx
            acc = acc + xq[:, off:off + Q] * dww[:, t:t + 1]
        acc = acc + dwb_ref[...]                              # (Cin,1) bias per channel

        # ---- LayerNorm over channels (= sublane rows), eps=1e-6, biased variance ----
        mu = acc[0:1, :]
        for c in range(1, Cin):
            mu = mu + acc[c:c + 1, :]
        mu = mu * inv_cin                                     # (1, Q)
        cen = acc - mu
        var = cen[0:1, :] * cen[0:1, :]
        for c in range(1, Cin):
            var = var + cen[c:c + 1, :] * cen[c:c + 1, :]
        var = var * inv_cin
        xn = cen * jax.lax.rsqrt(var + 1e-6)
        xn = xn * lng_ref[...] + lnb_ref[...]                 # per-channel affine (Cin,1)

        # ---- pwconv1 (Cin -> Hid) on the MXU + exact GELU on dense vregs ----
        h = jnp.dot(w1t_ref[...], xn, preferred_element_type=jnp.float32) + b1_ref[...]
        h = 0.5 * h * (1.0 + _erf(h * inv_sqrt2))             # (Hid, Q)

        # ---- GRN: per-channel L2 over valid spatial positions, channel-normalized ----
        msk = mask_ref[...]                                   # (1, Q), 0 on pad columns
        g2 = jnp.sum(h * h * msk, axis=-1, keepdims=True)     # (Hid, 1)
        gx = jnp.sqrt(g2)
        den = jnp.mean(gx, axis=0, keepdims=True) + 1e-6      # (1, 1)
        nx = gx / den                                         # (Hid, 1)
        h = grng_ref[...] * (h * nx) + grnb_ref[...] + h

        # ---- pwconv2 (Hid -> Cout) + residual 1x1 projection, fused bias ----
        xres = xq[:, 3 * Wp + 3: 3 * Wp + 3 + Q]              # unpadded input, same layout
        y = (jnp.dot(w2t_ref[...], h, preferred_element_type=jnp.float32)
             + jnp.dot(rwt_ref[...], xres, preferred_element_type=jnp.float32)
             + b2_ref[...])
        out_ref[0] = y                                        # lane-dense (Cout, Q) store

    return kernel


def generalized_block(x_nchw, p):
    """Forward pass. x_nchw: (N, Cin, H, W) float32 -> (N, Cout, H, W) float32."""
    N, Cin, H, W = x_nchw.shape
    Hid = p["w1"].shape[1]
    Cout = p["w2"].shape[1]
    Hp, Wp = H + 6, W + 6
    Q = H * Wp                                    # flattened output width (incl. pad cols)
    Lin = ((Hp * Wp + 6 + 127) // 128) * 128      # flattened padded input, lane-tile padded

    # Input prep: pad spatially by 3, flatten (h, w) onto the lane axis. No transposes.
    x = x_nchw.astype(jnp.float32)
    xpad = jnp.pad(x, ((0, 0), (0, 0), (3, 3), (3, 3)))
    xflat = jnp.pad(xpad.reshape(N, Cin, Hp * Wp), ((0, 0), (0, 0), (0, Lin - Hp * Wp)))

    # Parameter prep (tiny, one-time XLA ops): channel-major / transposed weights.
    dwwf = jnp.transpose(p["dw_w"].reshape(49, Cin))          # (Cin, 49)
    dwbf = p["dw_b"].reshape(Cin, 1)
    lng = p["ln_g"].reshape(Cin, 1)
    lnb = p["ln_b"].reshape(Cin, 1)
    w1t = jnp.transpose(p["w1"])                              # (Hid, Cin)
    b1f = p["b1"].reshape(Hid, 1)
    grng = p["grn_g"].reshape(Hid, 1)
    grnb = p["grn_b"].reshape(Hid, 1)
    w2t = jnp.transpose(p["w2"])                              # (Cout, Hid)
    rwt = jnp.transpose(p["res_w"])                           # (Cout, Cin)
    b2f = (p["b2"] + p["res_b"]).reshape(Cout, 1)             # fused output bias
    mask = (jnp.arange(Q) % Wp < W).astype(jnp.float32).reshape(1, Q)

    kernel = _make_kernel(Cin, Hid, Cout, Wp, Q)

    def full2(shape):
        return pl.BlockSpec(shape, lambda b: (0, 0))

    out_flat = pl.pallas_call(
        kernel,
        out_shape=jax.ShapeDtypeStruct((N, Cout, Q), jnp.float32),
        grid=(N,),
        in_specs=[
            pl.BlockSpec((1, Cin, Lin), lambda b: (b, 0, 0)),   # padded flattened input
            full2((Cin, 49)),     # dwconv weights (channel-major taps)
            full2((Cin, 1)),      # dwconv bias
            full2((Cin, 1)),      # LayerNorm gamma
            full2((Cin, 1)),      # LayerNorm beta
            full2((Hid, Cin)),    # pwconv1 weight (transposed)
            full2((Hid, 1)),      # pwconv1 bias
            full2((Hid, 1)),      # GRN gamma
            full2((Hid, 1)),      # GRN beta
            full2((Cout, Hid)),   # pwconv2 weight (transposed)
            full2((Cout, Cin)),   # residual 1x1 weight (transposed)
            full2((Cout, 1)),     # fused pwconv2 + residual bias
            full2((1, Q)),        # valid-column mask for GRN
        ],
        out_specs=pl.BlockSpec((1, Cout, Q), lambda b: (b, 0, 0)),
        compiler_params=pltpu.CompilerParams(
            dimension_semantics=("parallel",),
            vmem_limit_bytes=32 * 1024 * 1024,
        ),
    )(xflat, dwwf, dwbf, lng, lnb, w1t, b1f, grng, grnb, w2t, rwt, b2f, mask)

    # Strip the 6 padding columns per image row -> already NCHW.
    return out_flat.reshape(N, Cout, H, Wp)[:, :, :, :W]


def ref_forward(x_nchw, p):
    """Pure-JAX reference (mirrors the PyTorch module semantics exactly)."""
    x = jnp.transpose(x_nchw, (0, 2, 3, 1)).astype(jnp.float32)
    N, H, W, Cin = x.shape
    xpad = jnp.pad(x, ((0, 0), (3, 3), (3, 3), (0, 0)))
    dw = jnp.zeros_like(x)
    for ky in range(7):
        for kx in range(7):
            dw = dw + xpad[:, ky:ky + H, kx:kx + W, :] * p["dw_w"][ky, kx]
    dw = dw + p["dw_b"][0]
    mu = dw.mean(-1, keepdims=True)
    var = ((dw - mu) ** 2).mean(-1, keepdims=True)
    xn = (dw - mu) / jnp.sqrt(var + 1e-6) * p["ln_g"][0] + p["ln_b"][0]
    h = xn @ p["w1"] + p["b1"][0]
    h = 0.5 * h * (1.0 + jax.scipy.special.erf(h / np.sqrt(2.0)))   # exact GELU
    gx = jnp.sqrt(jnp.sum(h * h, axis=(1, 2), keepdims=True))       # GRN
    nx = gx / (jnp.mean(gx, axis=-1, keepdims=True) + 1e-6)
    h = p["grn_g"][0] * (h * nx) + p["grn_b"][0] + h
    y = h @ p["w2"] + p["b2"][0]
    res = x @ p["res_w"] + p["res_b"][0]
    return jnp.transpose(res + y, (0, 3, 1, 2))


if __name__ == "__main__":
    key = jax.random.PRNGKey(0)
    N, Cin, H, W = 2, 4, 16, 16
    expansion = 4
    Hid = expansion * Cin        # 16
    Cout = 8                     # in_dim != out_dim -> exercises residual_proj
    ks = jax.random.split(key, 13)

    x = jax.random.normal(ks[0], (N, Cin, H, W), jnp.float32)

    # Deterministic synthetic parameters (shapes follow the module's __init__).
    params = {
        "dw_w":  0.1 * jax.random.normal(ks[1], (7, 7, Cin), jnp.float32),
        "dw_b":  0.1 * jax.random.normal(ks[2], (1, Cin), jnp.float32),
        "ln_g":  1.0 + 0.1 * jax.random.normal(ks[3], (1, Cin), jnp.float32),
        "ln_b":  0.1 * jax.random.normal(ks[4], (1, Cin), jnp.float32),
        "w1":    0.2 * jax.random.normal(ks[5], (Cin, Hid), jnp.float32),
        "b1":    0.1 * jax.random.normal(ks[6], (1, Hid), jnp.float32),
        "grn_g": 0.5 * jax.random.normal(ks[7], (1, Hid), jnp.float32),
        "grn_b": 0.1 * jax.random.normal(ks[8], (1, Hid), jnp.float32),
        "w2":    0.2 * jax.random.normal(ks[9], (Hid, Cout), jnp.float32),
        "b2":    0.1 * jax.random.normal(ks[10], (1, Cout), jnp.float32),
        "res_w": 0.3 * jax.random.normal(ks[11], (Cin, Cout), jnp.float32),
        "res_b": 0.1 * jax.random.normal(ks[12], (1, Cout), jnp.float32),
    }

    out = jax.block_until_ready(generalized_block(x, params))
    ref = ref_forward(x, params)

    assert out.shape == (N, Cout, H, W), out.shape
    np.testing.assert_allclose(np.asarray(out), np.asarray(ref), rtol=2e-4, atol=2e-4)
    print("KERNEL_OK")
</pallas_src>

<mosaic_0001>
module attributes {stable_mosaic.version = 11 : i64} {
  func.func @kernel(%arg0: i32, %arg1: memref<1x4x512xf32, #tpu.memory_space<vmem>>, %arg2: memref<4x49xf32, #tpu.memory_space<vmem>>, %arg3: memref<4x1xf32, #tpu.memory_space<vmem>>, %arg4: memref<4x1xf32, #tpu.memory_space<vmem>>, %arg5: memref<4x1xf32, #tpu.memory_space<vmem>>, %arg6: memref<16x4xf32, #tpu.memory_space<vmem>>, %arg7: memref<16x1xf32, #tpu.memory_space<vmem>>, %arg8: memref<16x1xf32, #tpu.memory_space<vmem>>, %arg9: memref<16x1xf32, #tpu.memory_space<vmem>>, %arg10: memref<8x16xf32, #tpu.memory_space<vmem>>, %arg11: memref<8x4xf32, #tpu.memory_space<vmem>>, %arg12: memref<8x1xf32, #tpu.memory_space<vmem>>, %arg13: memref<1x352xf32, #tpu.memory_space<vmem>>, %arg14: memref<1x8x352xf32, #tpu.memory_space<vmem>>) attributes {dimension_semantics = [#tpu.dimension_semantics<parallel>], iteration_bounds = array<i64: 2>, scalar_prefetch = 0 : i64, scratch_operands = 0 : i64, tpu.core_type = #tpu.core_type<tc>, window_params = [{transform_indices = @transform_0, window_bounds = array<i64: 1, 4, 512>}, {pipeline_mode = #tpu.pipeline_mode<synchronous>, transform_indices = @transform_1, window_bounds = array<i64: 4, 49>}, {pipeline_mode = #tpu.pipeline_mode<synchronous>, transform_indices = @transform_2, window_bounds = array<i64: 4, 1>}, {pipeline_mode = #tpu.pipeline_mode<synchronous>, transform_indices = @transform_3, window_bounds = array<i64: 4, 1>}, {pipeline_mode = #tpu.pipeline_mode<synchronous>, transform_indices = @transform_4, window_bounds = array<i64: 4, 1>}, {pipeline_mode = #tpu.pipeline_mode<synchronous>, transform_indices = @transform_5, window_bounds = array<i64: 16, 4>}, {pipeline_mode = #tpu.pipeline_mode<synchronous>, transform_indices = @transform_6, window_bounds = array<i64: 16, 1>}, {pipeline_mode = #tpu.pipeline_mode<synchronous>, transform_indices = @transform_7, window_bounds = array<i64: 16, 1>}, {pipeline_mode = #tpu.pipeline_mode<synchronous>, transform_indices = @transform_8, window_bounds = array<i64: 16, 1>}, {pipeline_mode = #tpu.pipeline_mode<synchronous>, transform_indices = @transform_9, window_bounds = array<i64: 8, 16>}, {pipeline_mode = #tpu.pipeline_mode<synchronous>, transform_indices = @transform_10, window_bounds = array<i64: 8, 4>}, {pipeline_mode = #tpu.pipeline_mode<synchronous>, transform_indices = @transform_11, window_bounds = array<i64: 8, 1>}, {pipeline_mode = #tpu.pipeline_mode<synchronous>, transform_indices = @transform_12, window_bounds = array<i64: 1, 352>}, {transform_indices = @transform_13, window_bounds = array<i64: 1, 8, 352>}]} {
    %c0 = arith.constant 0 : index
    %c0_0 = arith.constant 0 : index
    %c0_1 = arith.constant 0 : index
    %0 = vector.load %arg1[%c0, %c0_0, %c0_1] : memref<1x4x512xf32, #tpu.memory_space<vmem>>, vector<1x4x512xf32>
    %1 = vector.shape_cast %0 : vector<1x4x512xf32> to vector<4x512xf32>
    %c0_2 = arith.constant 0 : index
    %c0_3 = arith.constant 0 : index
    %2 = vector.load %arg2[%c0_2, %c0_3] : memref<4x49xf32, #tpu.memory_space<vmem>>, vector<4x49xf32>
    %3 = vector.extract_strided_slice %1 {offsets = [0, 0], sizes = [4, 352], strides = [1, 1]} : vector<4x512xf32> to vector<4x352xf32>
    %4 = vector.extract_strided_slice %2 {offsets = [0, 0], sizes = [4, 1], strides = [1, 1]} : vector<4x49xf32> to vector<4x1xf32>
    %5 = vector.broadcast %4 : vector<4x1xf32> to vector<4x352xf32>
    %6 = arith.mulf %3, %5 : vector<4x352xf32>
    %7 = vector.extract_strided_slice %1 {offsets = [0, 1], sizes = [4, 352], strides = [1, 1]} : vector<4x512xf32> to vector<4x352xf32>
    %8 = vector.extract_strided_slice %2 {offsets = [0, 1], sizes = [4, 1], strides = [1, 1]} : vector<4x49xf32> to vector<4x1xf32>
    %9 = vector.broadcast %8 : vector<4x1xf32> to vector<4x352xf32>
    %10 = arith.mulf %7, %9 : vector<4x352xf32>
    %11 = arith.addf %6, %10 : vector<4x352xf32>
    %12 = vector.extract_strided_slice %1 {offsets = [0, 2], sizes = [4, 352], strides = [1, 1]} : vector<4x512xf32> to vector<4x352xf32>
    %13 = vector.extract_strided_slice %2 {offsets = [0, 2], sizes = [4, 1], strides = [1, 1]} : vector<4x49xf32> to vector<4x1xf32>
    %14 = vector.broadcast %13 : vector<4x1xf32> to vector<4x352xf32>
    %15 = arith.mulf %12, %14 : vector<4x352xf32>
    %16 = arith.addf %11, %15 : vector<4x352xf32>
    %17 = vector.extract_strided_slice %1 {offsets = [0, 3], sizes = [4, 352], strides = [1, 1]} : vector<4x512xf32> to vector<4x352xf32>
    %18 = vector.extract_strided_slice %2 {offsets = [0, 3], sizes = [4, 1], strides = [1, 1]} : vector<4x49xf32> to vector<4x1xf32>
    %19 = vector.broadcast %18 : vector<4x1xf32> to vector<4x352xf32>
    %20 = arith.mulf %17, %19 : vector<4x352xf32>
    %21 = arith.addf %16, %20 : vector<4x352xf32>
    %22 = vector.extract_strided_slice %1 {offsets = [0, 4], sizes = [4, 352], strides = [1, 1]} : vector<4x512xf32> to vector<4x352xf32>
    %23 = vector.extract_strided_slice %2 {offsets = [0, 4], sizes = [4, 1], strides = [1, 1]} : vector<4x49xf32> to vector<4x1xf32>
    %24 = vector.broadcast %23 : vector<4x1xf32> to vector<4x352xf32>
    %25 = arith.mulf %22, %24 : vector<4x352xf32>
    %26 = arith.addf %21, %25 : vector<4x352xf32>
    %27 = vector.extract_strided_slice %1 {offsets = [0, 5], sizes = [4, 352], strides = [1, 1]} : vector<4x512xf32> to vector<4x352xf32>
    %28 = vector.extract_strided_slice %2 {offsets = [0, 5], sizes = [4, 1], strides = [1, 1]} : vector<4x49xf32> to vector<4x1xf32>
    %29 = vector.broadcast %28 : vector<4x1xf32> to vector<4x352xf32>
    %30 = arith.mulf %27, %29 : vector<4x352xf32>
    %31 = arith.addf %26, %30 : vector<4x352xf32>
    %32 = vector.extract_strided_slice %1 {offsets = [0, 6], sizes = [4, 352], strides = [1, 1]} : vector<4x512xf32> to vector<4x352xf32>
    %33 = vector.extract_strided_slice %2 {offsets = [0, 6], sizes = [4, 1], strides = [1, 1]} : vector<4x49xf32> to vector<4x1xf32>
    %34 = vector.broadcast %33 : vector<4x1xf32> to vector<4x352xf32>
    %35 = arith.mulf %32, %34 : vector<4x352xf32>
    %36 = arith.addf %31, %35 : vector<4x352xf32>
    %37 = vector.extract_strided_slice %1 {offsets = [0, 22], sizes = [4, 352], strides = [1, 1]} : vector<4x512xf32> to vector<4x352xf32>
    %38 = vector.extract_strided_slice %2 {offsets = [0, 7], sizes = [4, 1], strides = [1, 1]} : vector<4x49xf32> to vector<4x1xf32>
    %39 = vector.broadcast %38 : vector<4x1xf32> to vector<4x352xf32>
    %40 = arith.mulf %37, %39 : vector<4x352xf32>
    %41 = arith.addf %36, %40 : vector<4x352xf32>
    %42 = vector.extract_strided_slice %1 {offsets = [0, 23], sizes = [4, 352], strides = [1, 1]} : vector<4x512xf32> to vector<4x352xf32>
    %43 = vector.extract_strided_slice %2 {offsets = [0, 8], sizes = [4, 1], strides = [1, 1]} : vector<4x49xf32> to vector<4x1xf32>
    %44 = vector.broadcast %43 : vector<4x1xf32> to vector<4x352xf32>
    %45 = arith.mulf %42, %44 : vector<4x352xf32>
    %46 = arith.addf %41, %45 : vector<4x352xf32>
    %47 = vector.extract_strided_slice %1 {offsets = [0, 24], sizes = [4, 352], strides = [1, 1]} : vector<4x512xf32> to vector<4x352xf32>
    %48 = vector.extract_strided_slice %2 {offsets = [0, 9], sizes = [4, 1], strides = [1, 1]} : vector<4x49xf32> to vector<4x1xf32>
    %49 = vector.broadcast %48 : vector<4x1xf32> to vector<4x352xf32>
    %50 = arith.mulf %47, %49 : vector<4x352xf32>
    %51 = arith.addf %46, %50 : vector<4x352xf32>
    %52 = vector.extract_strided_slice %1 {offsets = [0, 25], sizes = [4, 352], strides = [1, 1]} : vector<4x512xf32> to vector<4x352xf32>
    %53 = vector.extract_strided_slice %2 {offsets = [0, 10], sizes = [4, 1], strides = [1, 1]} : vector<4x49xf32> to vector<4x1xf32>
    %54 = vector.broadcast %53 : vector<4x1xf32> to vector<4x352xf32>
    %55 = arith.mulf %52, %54 : vector<4x352xf32>
    %56 = arith.addf %51, %55 : vector<4x352xf32>
    %57 = vector.extract_strided_slice %1 {offsets = [0, 26], sizes = [4, 352], strides = [1, 1]} : vector<4x512xf32> to vector<4x352xf32>
    %58 = vector.extract_strided_slice %2 {offsets = [0, 11], sizes = [4, 1], strides = [1, 1]} : vector<4x49xf32> to vector<4x1xf32>
    %59 = vector.broadcast %58 : vector<4x1xf32> to vector<4x352xf32>
    %60 = arith.mulf %57, %59 : vector<4x352xf32>
    %61 = arith.addf %56, %60 : vector<4x352xf32>
    %62 = vector.extract_strided_slice %1 {offsets = [0, 27], sizes = [4, 352], strides = [1, 1]} : vector<4x512xf32> to vector<4x352xf32>
    %63 = vector.extract_strided_slice %2 {offsets = [0, 12], sizes = [4, 1], strides = [1, 1]} : vector<4x49xf32> to vector<4x1xf32>
    %64 = vector.broadcast %63 : vector<4x1xf32> to vector<4x352xf32>
    %65 = arith.mulf %62, %64 : vector<4x352xf32>
    %66 = arith.addf %61, %65 : vector<4x352xf32>
    %67 = vector.extract_strided_slice %1 {offsets = [0, 28], sizes = [4, 352], strides = [1, 1]} : vector<4x512xf32> to vector<4x352xf32>
    %68 = vector.extract_strided_slice %2 {offsets = [0, 13], sizes = [4, 1], strides = [1, 1]} : vector<4x49xf32> to vector<4x1xf32>
    %69 = vector.broadcast %68 : vector<4x1xf32> to vector<4x352xf32>
    %70 = arith.mulf %67, %69 : vector<4x352xf32>
    %71 = arith.addf %66, %70 : vector<4x352xf32>
    %72 = vector.extract_strided_slice %1 {offsets = [0, 44], sizes = [4, 352], strides = [1, 1]} : vector<4x512xf32> to vector<4x352xf32>
    %73 = vector.extract_strided_slice %2 {offsets = [0, 14], sizes = [4, 1], strides = [1, 1]} : vector<4x49xf32> to vector<4x1xf32>
    %74 = vector.broadcast %73 : vector<4x1xf32> to vector<4x352xf32>
    %75 = arith.mulf %72, %74 : vector<4x352xf32>
    %76 = arith.addf %71, %75 : vector<4x352xf32>
    %77 = vector.extract_strided_slice %1 {offsets = [0, 45], sizes = [4, 352], strides = [1, 1]} : vector<4x512xf32> to vector<4x352xf32>
    %78 = vector.extract_strided_slice %2 {offsets = [0, 15], sizes = [4, 1], strides = [1, 1]} : vector<4x49xf32> to vector<4x1xf32>
    %79 = vector.broadcast %78 : vector<4x1xf32> to vector<4x352xf32>
    %80 = arith.mulf %77, %79 : vector<4x352xf32>
    %81 = arith.addf %76, %80 : vector<4x352xf32>
    %82 = vector.extract_strided_slice %1 {offsets = [0, 46], sizes = [4, 352], strides = [1, 1]} : vector<4x512xf32> to vector<4x352xf32>
    %83 = vector.extract_strided_slice %2 {offsets = [0, 16], sizes = [4, 1], strides = [1, 1]} : vector<4x49xf32> to vector<4x1xf32>
    %84 = vector.broadcast %83 : vector<4x1xf32> to vector<4x352xf32>
    %85 = arith.mulf %82, %84 : vector<4x352xf32>
    %86 = arith.addf %81, %85 : vector<4x352xf32>
    %87 = vector.extract_strided_slice %1 {offsets = [0, 47], sizes = [4, 352], strides = [1, 1]} : vector<4x512xf32> to vector<4x352xf32>
    %88 = vector.extract_strided_slice %2 {offsets = [0, 17], sizes = [4, 1], strides = [1, 1]} : vector<4x49xf32> to vector<4x1xf32>
    %89 = vector.broadcast %88 : vector<4x1xf32> to vector<4x352xf32>
    %90 = arith.mulf %87, %89 : vector<4x352xf32>
    %91 = arith.addf %86, %90 : vector<4x352xf32>
    %92 = vector.extract_strided_slice %1 {offsets = [0, 48], sizes = [4, 352], strides = [1, 1]} : vector<4x512xf32> to vector<4x352xf32>
    %93 = vector.extract_strided_slice %2 {offsets = [0, 18], sizes = [4, 1], strides = [1, 1]} : vector<4x49xf32> to vector<4x1xf32>
    %94 = vector.broadcast %93 : vector<4x1xf32> to vector<4x352xf32>
    %95 = arith.mulf %92, %94 : vector<4x352xf32>
    %96 = arith.addf %91, %95 : vector<4x352xf32>
    %97 = vector.extract_strided_slice %1 {offsets = [0, 49], sizes = [4, 352], strides = [1, 1]} : vector<4x512xf32> to vector<4x352xf32>
    %98 = vector.extract_strided_slice %2 {offsets = [0, 19], sizes = [4, 1], strides = [1, 1]} : vector<4x49xf32> to vector<4x1xf32>
    %99 = vector.broadcast %98 : vector<4x1xf32> to vector<4x352xf32>
    %100 = arith.mulf %97, %99 : vector<4x352xf32>
    %101 = arith.addf %96, %100 : vector<4x352xf32>
    %102 = vector.extract_strided_slice %1 {offsets = [0, 50], sizes = [4, 352], strides = [1, 1]} : vector<4x512xf32> to vector<4x352xf32>
    %103 = vector.extract_strided_slice %2 {offsets = [0, 20], sizes = [4, 1], strides = [1, 1]} : vector<4x49xf32> to vector<4x1xf32>
    %104 = vector.broadcast %103 : vector<4x1xf32> to vector<4x352xf32>
    %105 = arith.mulf %102, %104 : vector<4x352xf32>
    %106 = arith.addf %101, %105 : vector<4x352xf32>
    %107 = vector.extract_strided_slice %1 {offsets = [0, 66], sizes = [4, 352], strides = [1, 1]} : vector<4x512xf32> to vector<4x352xf32>
    %108 = vector.extract_strided_slice %2 {offsets = [0, 21], sizes = [4, 1], strides = [1, 1]} : vector<4x49xf32> to vector<4x1xf32>
    %109 = vector.broadcast %108 : vector<4x1xf32> to vector<4x352xf32>
    %110 = arith.mulf %107, %109 : vector<4x352xf32>
    %111 = arith.addf %106, %110 : vector<4x352xf32>
    %112 = vector.extract_strided_slice %1 {offsets = [0, 67], sizes = [4, 352], strides = [1, 1]} : vector<4x512xf32> to vector<4x352xf32>
    %113 = vector.extract_strided_slice %2 {offsets = [0, 22], sizes = [4, 1], strides = [1, 1]} : vector<4x49xf32> to vector<4x1xf32>
    %114 = vector.broadcast %113 : vector<4x1xf32> to vector<4x352xf32>
    %115 = arith.mulf %112, %114 : vector<4x352xf32>
    %116 = arith.addf %111, %115 : vector<4x352xf32>
    %117 = vector.extract_strided_slice %1 {offsets = [0, 68], sizes = [4, 352], strides = [1, 1]} : vector<4x512xf32> to vector<4x352xf32>
    %118 = vector.extract_strided_slice %2 {offsets = [0, 23], sizes = [4, 1], strides = [1, 1]} : vector<4x49xf32> to vector<4x1xf32>
    %119 = vector.broadcast %118 : vector<4x1xf32> to vector<4x352xf32>
    %120 = arith.mulf %117, %119 : vector<4x352xf32>
    %121 = arith.addf %116, %120 : vector<4x352xf32>
    %122 = vector.extract_strided_slice %1 {offsets = [0, 69], sizes = [4, 352], strides = [1, 1]} : vector<4x512xf32> to vector<4x352xf32>
    %123 = vector.extract_strided_slice %2 {offsets = [0, 24], sizes = [4, 1], strides = [1, 1]} : vector<4x49xf32> to vector<4x1xf32>
    %124 = vector.broadcast %123 : vector<4x1xf32> to vector<4x352xf32>
    %125 = arith.mulf %122, %124 : vector<4x352xf32>
    %126 = arith.addf %121, %125 : vector<4x352xf32>
    %127 = vector.extract_strided_slice %1 {offsets = [0, 70], sizes = [4, 352], strides = [1, 1]} : vector<4x512xf32> to vector<4x352xf32>
    %128 = vector.extract_strided_slice %2 {offsets = [0, 25], sizes = [4, 1], strides = [1, 1]} : vector<4x49xf32> to vector<4x1xf32>
    %129 = vector.broadcast %128 : vector<4x1xf32> to vector<4x352xf32>
    %130 = arith.mulf %127, %129 : vector<4x352xf32>
    %131 = arith.addf %126, %130 : vector<4x352xf32>
    %132 = vector.extract_strided_slice %1 {offsets = [0, 71], sizes = [4, 352], strides = [1, 1]} : vector<4x512xf32> to vector<4x352xf32>
    %133 = vector.extract_strided_slice %2 {offsets = [0, 26], sizes = [4, 1], strides = [1, 1]} : vector<4x49xf32> to vector<4x1xf32>
    %134 = vector.broadcast %133 : vector<4x1xf32> to vector<4x352xf32>
    %135 = arith.mulf %132, %134 : vector<4x352xf32>
    %136 = arith.addf %131, %135 : vector<4x352xf32>
    %137 = vector.extract_strided_slice %1 {offsets = [0, 72], sizes = [4, 352], strides = [1, 1]} : vector<4x512xf32> to vector<4x352xf32>
    %138 = vector.extract_strided_slice %2 {offsets = [0, 27], sizes = [4, 1], strides = [1, 1]} : vector<4x49xf32> to vector<4x1xf32>
    %139 = vector.broadcast %138 : vector<4x1xf32> to vector<4x352xf32>
    %140 = arith.mulf %137, %139 : vector<4x352xf32>
    %141 = arith.addf %136, %140 : vector<4x352xf32>
    %142 = vector.extract_strided_slice %1 {offsets = [0, 88], sizes = [4, 352], strides = [1, 1]} : vector<4x512xf32> to vector<4x352xf32>
    %143 = vector.extract_strided_slice %2 {offsets = [0, 28], sizes = [4, 1], strides = [1, 1]} : vector<4x49xf32> to vector<4x1xf32>
    %144 = vector.broadcast %143 : vector<4x1xf32> to vector<4x352xf32>
    %145 = arith.mulf %142, %144 : vector<4x352xf32>
    %146 = arith.addf %141, %145 : vector<4x352xf32>
    %147 = vector.extract_strided_slice %1 {offsets = [0, 89], sizes = [4, 352], strides = [1, 1]} : vector<4x512xf32> to vector<4x352xf32>
    %148 = vector.extract_strided_slice %2 {offsets = [0, 29], sizes = [4, 1], strides = [1, 1]} : vector<4x49xf32> to vector<4x1xf32>
    %149 = vector.broadcast %148 : vector<4x1xf32> to vector<4x352xf32>
    %150 = arith.mulf %147, %149 : vector<4x352xf32>
    %151 = arith.addf %146, %150 : vector<4x352xf32>
    %152 = vector.extract_strided_slice %1 {offsets = [0, 90], sizes = [4, 352], strides = [1, 1]} : vector<4x512xf32> to vector<4x352xf32>
    %153 = vector.extract_strided_slice %2 {offsets = [0, 30], sizes = [4, 1], strides = [1, 1]} : vector<4x49xf32> to vector<4x1xf32>
    %154 = vector.broadcast %153 : vector<4x1xf32> to vector<4x352xf32>
    %155 = arith.mulf %152, %154 : vector<4x352xf32>
    %156 = arith.addf %151, %155 : vector<4x352xf32>
    %157 = vector.extract_strided_slice %1 {offsets = [0, 91], sizes = [4, 352], strides = [1, 1]} : vector<4x512xf32> to vector<4x352xf32>
    %158 = vector.extract_strided_slice %2 {offsets = [0, 31], sizes = [4, 1], strides = [1, 1]} : vector<4x49xf32> to vector<4x1xf32>
    %159 = vector.broadcast %158 : vector<4x1xf32> to vector<4x352xf32>
    %160 = arith.mulf %157, %159 : vector<4x352xf32>
    %161 = arith.addf %156, %160 : vector<4x352xf32>
    %162 = vector.extract_strided_slice %1 {offsets = [0, 92], sizes = [4, 352], strides = [1, 1]} : vector<4x512xf32> to vector<4x352xf32>
    %163 = vector.extract_strided_slice %2 {offsets = [0, 32], sizes = [4, 1], strides = [1, 1]} : vector<4x49xf32> to vector<4x1xf32>
    %164 = vector.broadcast %163 : vector<4x1xf32> to vector<4x352xf32>
    %165 = arith.mulf %162, %164 : vector<4x352xf32>
    %166 = arith.addf %161, %165 : vector<4x352xf32>
    %167 = vector.extract_strided_slice %1 {offsets = [0, 93], sizes = [4, 352], strides = [1, 1]} : vector<4x512xf32> to vector<4x352xf32>
    %168 = vector.extract_strided_slice %2 {offsets = [0, 33], sizes = [4, 1], strides = [1, 1]} : vector<4x49xf32> to vector<4x1xf32>
    %169 = vector.broadcast %168 : vector<4x1xf32> to vector<4x352xf32>
    %170 = arith.mulf %167, %169 : vector<4x352xf32>
    %171 = arith.addf %166, %170 : vector<4x352xf32>
    %172 = vector.extract_strided_slice %1 {offsets = [0, 94], sizes = [4, 352], strides = [1, 1]} : vector<4x512xf32> to vector<4x352xf32>
    %173 = vector.extract_strided_slice %2 {offsets = [0, 34], sizes = [4, 1], strides = [1, 1]} : vector<4x49xf32> to vector<4x1xf32>
    %174 = vector.broadcast %173 : vector<4x1xf32> to vector<4x352xf32>
    %175 = arith.mulf %172, %174 : vector<4x352xf32>
    %176 = arith.addf %171, %175 : vector<4x352xf32>
    %177 = vector.extract_strided_slice %1 {offsets = [0, 110], sizes = [4, 352], strides = [1, 1]} : vector<4x512xf32> to vector<4x352xf32>
    %178 = vector.extract_strided_slice %2 {offsets = [0, 35], sizes = [4, 1], strides = [1, 1]} : vector<4x49xf32> to vector<4x1xf32>
    %179 = vector.broadcast %178 : vector<4x1xf32> to vector<4x352xf32>
    %180 = arith.mulf %177, %179 : vector<4x352xf32>
    %181 = arith.addf %176, %180 : vector<4x352xf32>
    %182 = vector.extract_strided_slice %1 {offsets = [0, 111], sizes = [4, 352], strides = [1, 1]} : vector<4x512xf32> to vector<4x352xf32>
    %183 = vector.extract_strided_slice %2 {offsets = [0, 36], sizes = [4, 1], strides = [1, 1]} : vector<4x49xf32> to vector<4x1xf32>
    %184 = vector.broadcast %183 : vector<4x1xf32> to vector<4x352xf32>
    %185 = arith.mulf %182, %184 : vector<4x352xf32>
    %186 = arith.addf %181, %185 : vector<4x352xf32>
    %187 = vector.extract_strided_slice %1 {offsets = [0, 112], sizes = [4, 352], strides = [1, 1]} : vector<4x512xf32> to vector<4x352xf32>
    %188 = vector.extract_strided_slice %2 {offsets = [0, 37], sizes = [4, 1], strides = [1, 1]} : vector<4x49xf32> to vector<4x1xf32>
    %189 = vector.broadcast %188 : vector<4x1xf32> to vector<4x352xf32>
    %190 = arith.mulf %187, %189 : vector<4x352xf32>
    %191 = arith.addf %186, %190 : vector<4x352xf32>
    %192 = vector.extract_strided_slice %1 {offsets = [0, 113], sizes = [4, 352], strides = [1, 1]} : vector<4x512xf32> to vector<4x352xf32>
    %193 = vector.extract_strided_slice %2 {offsets = [0, 38], sizes = [4, 1], strides = [1, 1]} : vector<4x49xf32> to vector<4x1xf32>
    %194 = vector.broadcast %193 : vector<4x1xf32> to vector<4x352xf32>
    %195 = arith.mulf %192, %194 : vector<4x352xf32>
    %196 = arith.addf %191, %195 : vector<4x352xf32>
    %197 = vector.extract_strided_slice %1 {offsets = [0, 114], sizes = [4, 352], strides = [1, 1]} : vector<4x512xf32> to vector<4x352xf32>
    %198 = vector.extract_strided_slice %2 {offsets = [0, 39], sizes = [4, 1], strides = [1, 1]} : vector<4x49xf32> to vector<4x1xf32>
    %199 = vector.broadcast %198 : vector<4x1xf32> to vector<4x352xf32>
    %200 = arith.mulf %197, %199 : vector<4x352xf32>
    %201 = arith.addf %196, %200 : vector<4x352xf32>
    %202 = vector.extract_strided_slice %1 {offsets = [0, 115], sizes = [4, 352], strides = [1, 1]} : vector<4x512xf32> to vector<4x352xf32>
    %203 = vector.extract_strided_slice %2 {offsets = [0, 40], sizes = [4, 1], strides = [1, 1]} : vector<4x49xf32> to vector<4x1xf32>
    %204 = vector.broadcast %203 : vector<4x1xf32> to vector<4x352xf32>
    %205 = arith.mulf %202, %204 : vector<4x352xf32>
    %206 = arith.addf %201, %205 : vector<4x352xf32>
    %207 = vector.extract_strided_slice %1 {offsets = [0, 116], sizes = [4, 352], strides = [1, 1]} : vector<4x512xf32> to vector<4x352xf32>
    %208 = vector.extract_strided_slice %2 {offsets = [0, 41], sizes = [4, 1], strides = [1, 1]} : vector<4x49xf32> to vector<4x1xf32>
    %209 = vector.broadcast %208 : vector<4x1xf32> to vector<4x352xf32>
    %210 = arith.mulf %207, %209 : vector<4x352xf32>
    %211 = arith.addf %206, %210 : vector<4x352xf32>
    %212 = vector.extract_strided_slice %1 {offsets = [0, 132], sizes = [4, 352], strides = [1, 1]} : vector<4x512xf32> to vector<4x352xf32>
    %213 = vector.extract_strided_slice %2 {offsets = [0, 42], sizes = [4, 1], strides = [1, 1]} : vector<4x49xf32> to vector<4x1xf32>
    %214 = vector.broadcast %213 : vector<4x1xf32> to vector<4x352xf32>
    %215 = arith.mulf %212, %214 : vector<4x352xf32>
    %216 = arith.addf %211, %215 : vector<4x352xf32>
    %217 = vector.extract_strided_slice %1 {offsets = [0, 133], sizes = [4, 352], strides = [1, 1]} : vector<4x512xf32> to vector<4x352xf32>
    %218 = vector.extract_strided_slice %2 {offsets = [0, 43], sizes = [4, 1], strides = [1, 1]} : vector<4x49xf32> to vector<4x1xf32>
    %219 = vector.broadcast %218 : vector<4x1xf32> to vector<4x352xf32>
    %220 = arith.mulf %217, %219 : vector<4x352xf32>
    %221 = arith.addf %216, %220 : vector<4x352xf32>
    %222 = vector.extract_strided_slice %1 {offsets = [0, 134], sizes = [4, 352], strides = [1, 1]} : vector<4x512xf32> to vector<4x352xf32>
    %223 = vector.extract_strided_slice %2 {offsets = [0, 44], sizes = [4, 1], strides = [1, 1]} : vector<4x49xf32> to vector<4x1xf32>
    %224 = vector.broadcast %223 : vector<4x1xf32> to vector<4x352xf32>
    %225 = arith.mulf %222, %224 : vector<4x352xf32>
    %226 = arith.addf %221, %225 : vector<4x352xf32>
    %227 = vector.extract_strided_slice %1 {offsets = [0, 135], sizes = [4, 352], strides = [1, 1]} : vector<4x512xf32> to vector<4x352xf32>
    %228 = vector.extract_strided_slice %2 {offsets = [0, 45], sizes = [4, 1], strides = [1, 1]} : vector<4x49xf32> to vector<4x1xf32>
    %229 = vector.broadcast %228 : vector<4x1xf32> to vector<4x352xf32>
    %230 = arith.mulf %227, %229 : vector<4x352xf32>
    %231 = arith.addf %226, %230 : vector<4x352xf32>
    %232 = vector.extract_strided_slice %1 {offsets = [0, 136], sizes = [4, 352], strides = [1, 1]} : vector<4x512xf32> to vector<4x352xf32>
    %233 = vector.extract_strided_slice %2 {offsets = [0, 46], sizes = [4, 1], strides = [1, 1]} : vector<4x49xf32> to vector<4x1xf32>
    %234 = vector.broadcast %233 : vector<4x1xf32> to vector<4x352xf32>
    %235 = arith.mulf %232, %234 : vector<4x352xf32>
    %236 = arith.addf %231, %235 : vector<4x352xf32>
    %237 = vector.extract_strided_slice %1 {offsets = [0, 137], sizes = [4, 352], strides = [1, 1]} : vector<4x512xf32> to vector<4x352xf32>
    %238 = vector.extract_strided_slice %2 {offsets = [0, 47], sizes = [4, 1], strides = [1, 1]} : vector<4x49xf32> to vector<4x1xf32>
    %239 = vector.broadcast %238 : vector<4x1xf32> to vector<4x352xf32>
    %240 = arith.mulf %237, %239 : vector<4x352xf32>
    %241 = arith.addf %236, %240 : vector<4x352xf32>
    %242 = vector.extract_strided_slice %1 {offsets = [0, 138], sizes = [4, 352], strides = [1, 1]} : vector<4x512xf32> to vector<4x352xf32>
    %243 = vector.extract_strided_slice %2 {offsets = [0, 48], sizes = [4, 1], strides = [1, 1]} : vector<4x49xf32> to vector<4x1xf32>
    %244 = vector.broadcast %243 : vector<4x1xf32> to vector<4x352xf32>
    %245 = arith.mulf %242, %244 : vector<4x352xf32>
    %246 = arith.addf %241, %245 : vector<4x352xf32>
    %c0_4 = arith.constant 0 : index
    %c0_5 = arith.constant 0 : index
    %247 = vector.load %arg3[%c0_4, %c0_5] : memref<4x1xf32, #tpu.memory_space<vmem>>, vector<4x1xf32>
    %248 = vector.broadcast %247 : vector<4x1xf32> to vector<4x352xf32>
    %249 = arith.addf %246, %248 : vector<4x352xf32>
    %250 = vector.extract_strided_slice %249 {offsets = [0, 0], sizes = [1, 352], strides = [1, 1]} : vector<4x352xf32> to vector<1x352xf32>
    %251 = vector.extract_strided_slice %249 {offsets = [1, 0], sizes = [1, 352], strides = [1, 1]} : vector<4x352xf32> to vector<1x352xf32>
    %252 = arith.addf %250, %251 : vector<1x352xf32>
    %253 = vector.extract_strided_slice %249 {offsets = [2, 0], sizes = [1, 352], strides = [1, 1]} : vector<4x352xf32> to vector<1x352xf32>
    %254 = arith.addf %252, %253 : vector<1x352xf32>
    %255 = vector.extract_strided_slice %249 {offsets = [3, 0], sizes = [1, 352], strides = [1, 1]} : vector<4x352xf32> to vector<1x352xf32>
    %256 = arith.addf %254, %255 : vector<1x352xf32>
    %cst = arith.constant 2.500000e-01 : f32
    %257 = vector.broadcast %cst : f32 to vector<1x352xf32>
    %258 = arith.mulf %256, %257 : vector<1x352xf32>
    %259 = vector.broadcast %258 : vector<1x352xf32> to vector<4x352xf32>
    %260 = arith.subf %249, %259 : vector<4x352xf32>
    %261 = vector.extract_strided_slice %260 {offsets = [0, 0], sizes = [1, 352], strides = [1, 1]} : vector<4x352xf32> to vector<1x352xf32>
    %262 = vector.extract_strided_slice %260 {offsets = [0, 0], sizes = [1, 352], strides = [1, 1]} : vector<4x352xf32> to vector<1x352xf32>
    %263 = arith.mulf %261, %262 : vector<1x352xf32>
    %264 = vector.extract_strided_slice %260 {offsets = [1, 0], sizes = [1, 352], strides = [1, 1]} : vector<4x352xf32> to vector<1x352xf32>
    %265 = vector.extract_strided_slice %260 {offsets = [1, 0], sizes = [1, 352], strides = [1, 1]} : vector<4x352xf32> to vector<1x352xf32>
    %266 = arith.mulf %264, %265 : vector<1x352xf32>
    %267 = arith.addf %263, %266 : vector<1x352xf32>
    %268 = vector.extract_strided_slice %260 {offsets = [2, 0], sizes = [1, 352], strides = [1, 1]} : vector<4x352xf32> to vector<1x352xf32>
    %269 = vector.extract_strided_slice %260 {offsets = [2, 0], sizes = [1, 352], strides = [1, 1]} : vector<4x352xf32> to vector<1x352xf32>
    %270 = arith.mulf %268, %269 : vector<1x352xf32>
    %271 = arith.addf %267, %270 : vector<1x352xf32>
    %272 = vector.extract_strided_slice %260 {offsets = [3, 0], sizes = [1, 352], strides = [1, 1]} : vector<4x352xf32> to vector<1x352xf32>
    %273 = vector.extract_strided_slice %260 {offsets = [3, 0], sizes = [1, 352], strides = [1, 1]} : vector<4x352xf32> to vector<1x352xf32>
    %274 = arith.mulf %272, %273 : vector<1x352xf32>
    %275 = arith.addf %271, %274 : vector<1x352xf32>
    %cst_6 = arith.constant 2.500000e-01 : f32
    %276 = vector.broadcast %cst_6 : f32 to vector<1x352xf32>
    %277 = arith.mulf %275, %276 : vector<1x352xf32>
    %cst_7 = arith.constant 9.99999997E-7 : f32
    %278 = vector.broadcast %cst_7 : f32 to vector<1x352xf32>
    %279 = arith.addf %277, %278 : vector<1x352xf32>
    %280 = math.rsqrt %279 : vector<1x352xf32>
    %281 = vector.broadcast %280 : vector<1x352xf32> to vector<4x352xf32>
    %282 = arith.mulf %260, %281 : vector<4x352xf32>
    %c0_8 = arith.constant 0 : index
    %c0_9 = arith.constant 0 : index
    %283 = vector.load %arg4[%c0_8, %c0_9] : memref<4x1xf32, #tpu.memory_space<vmem>>, vector<4x1xf32>
    %284 = vector.broadcast %283 : vector<4x1xf32> to vector<4x352xf32>
    %285 = arith.mulf %282, %284 : vector<4x352xf32>
    %c0_10 = arith.constant 0 : index
    %c0_11 = arith.constant 0 : index
    %286 = vector.load %arg5[%c0_10, %c0_11] : memref<4x1xf32, #tpu.memory_space<vmem>>, vector<4x1xf32>
    %287 = vector.broadcast %286 : vector<4x1xf32> to vector<4x352xf32>
    %288 = arith.addf %285, %287 : vector<4x352xf32>
    %c0_12 = arith.constant 0 : index
    %c0_13 = arith.constant 0 : index
    %289 = vector.load %arg6[%c0_12, %c0_13] : memref<16x4xf32, #tpu.memory_space<vmem>>, vector<16x4xf32>
    %cst_14 = arith.constant dense<0.000000e+00> : vector<16x352xf32>
    %290 = tpu.matmul %289, %288, %cst_14 {dimension_numbers = #tpu.dot_dimension_numbers<[1], [0], [0], [1], [0, 0, 1, 1], [], []>} : vector<16x4xf32>, vector<4x352xf32>, vector<16x352xf32> -> vector<16x352xf32>
    %c0_15 = arith.constant 0 : index
    %c0_16 = arith.constant 0 : index
    %291 = vector.load %arg7[%c0_15, %c0_16] : memref<16x1xf32, #tpu.memory_space<vmem>>, vector<16x1xf32>
    %292 = vector.broadcast %291 : vector<16x1xf32> to vector<16x352xf32>
    %293 = arith.addf %290, %292 : vector<16x352xf32>
    %cst_17 = arith.constant 5.000000e-01 : f32
    %294 = vector.broadcast %cst_17 : f32 to vector<16x352xf32>
    %295 = arith.mulf %294, %293 : vector<16x352xf32>
    %cst_18 = arith.constant 0.707106769 : f32
    %296 = vector.broadcast %cst_18 : f32 to vector<16x352xf32>
    %297 = arith.mulf %293, %296 : vector<16x352xf32>
    %cst_19 = arith.constant 0.000000e+00 : f32
    %298 = vector.broadcast %cst_19 : f32 to vector<16x352xf32>
    %299 = arith.cmpf oge, %297, %298 : vector<16x352xf32>
    %cst_20 = arith.constant 1.000000e+00 : f32
    %cst_21 = arith.constant -1.000000e+00 : f32
    %300 = vector.broadcast %cst_20 : f32 to vector<16x352xf32>
    %301 = vector.broadcast %cst_21 : f32 to vector<16x352xf32>
    %302 = arith.select %299, %300, %301 : vector<16x352xi1>, vector<16x352xf32>
    %303 = math.absf %297 : vector<16x352xf32>
    %cst_22 = arith.constant 0.327591091 : f32
    %304 = vector.broadcast %cst_22 : f32 to vector<16x352xf32>
    %305 = arith.mulf %304, %303 : vector<16x352xf32>
    %cst_23 = arith.constant 1.000000e+00 : f32
    %306 = vector.broadcast %cst_23 : f32 to vector<16x352xf32>
    %307 = arith.addf %306, %305 : vector<16x352xf32>
    %cst_24 = arith.constant 1.000000e+00 : f32
    %308 = vector.broadcast %cst_24 : f32 to vector<16x352xf32>
    %309 = arith.divf %308, %307 : vector<16x352xf32>
    %cst_25 = arith.constant 1.06140542 : f32
    %310 = vector.broadcast %cst_25 : f32 to vector<16x352xf32>
    %311 = arith.mulf %310, %309 : vector<16x352xf32>
    %cst_26 = arith.constant -1.45315206 : f32
    %312 = vector.broadcast %cst_26 : f32 to vector<16x352xf32>
    %313 = arith.addf %311, %312 : vector<16x352xf32>
    %314 = arith.mulf %313, %309 : vector<16x352xf32>
    %cst_27 = arith.constant 1.42141378 : f32
    %315 = vector.broadcast %cst_27 : f32 to vector<16x352xf32>
    %316 = arith.addf %314, %315 : vector<16x352xf32>
    %317 = arith.mulf %316, %309 : vector<16x352xf32>
    %cst_28 = arith.constant -0.284496725 : f32
    %318 = vector.broadcast %cst_28 : f32 to vector<16x352xf32>
    %319 = arith.addf %317, %318 : vector<16x352xf32>
    %320 = arith.mulf %319, %309 : vector<16x352xf32>
    %cst_29 = arith.constant 0.254829586 : f32
    %321 = vector.broadcast %cst_29 : f32 to vector<16x352xf32>
    %322 = arith.addf %320, %321 : vector<16x352xf32>
    %323 = arith.mulf %322, %309 : vector<16x352xf32>
    %cst_30 = arith.constant 0.000000e+00 : f32
    %324 = vector.broadcast %cst_30 : f32 to vector<16x352xf32>
    %325 = arith.subf %324, %303 : vector<16x352xf32>
    %326 = arith.mulf %325, %303 : vector<16x352xf32>
    %327 = math.exp %326 : vector<16x352xf32>
    %328 = arith.mulf %323, %327 : vector<16x352xf32>
    %cst_31 = arith.constant 1.000000e+00 : f32
    %329 = vector.broadcast %cst_31 : f32 to vector<16x352xf32>
    %330 = arith.subf %329, %328 : vector<16x352xf32>
    %331 = arith.mulf %302, %330 : vector<16x352xf32>
    %cst_32 = arith.constant 1.000000e+00 : f32
    %332 = vector.broadcast %cst_32 : f32 to vector<16x352xf32>
    %333 = arith.addf %332, %331 : vector<16x352xf32>
    %334 = arith.mulf %295, %333 : vector<16x352xf32>
    %c0_33 = arith.constant 0 : index
    %c0_34 = arith.constant 0 : index
    %335 = vector.load %arg13[%c0_33, %c0_34] : memref<1x352xf32, #tpu.memory_space<vmem>>, vector<1x352xf32>
    %336 = arith.mulf %334, %334 : vector<16x352xf32>
    %337 = vector.broadcast %335 : vector<1x352xf32> to vector<16x352xf32>
    %338 = arith.mulf %336, %337 : vector<16x352xf32>
    %cst_35 = arith.constant dense<0.000000e+00> : vector<16xf32>
    %339 = vector.multi_reduction <add>, %338, %cst_35 [1] : vector<16x352xf32> to vector<16xf32>
    %340 = vector.shape_cast %339 : vector<16xf32> to vector<16x1xf32>
    %341 = math.sqrt %340 : vector<16x1xf32>
    %cst_36 = arith.constant dense<0.000000e+00> : vector<1xf32>
    %342 = vector.multi_reduction <add>, %341, %cst_36 [0] : vector<16x1xf32> to vector<1xf32>
    %343 = vector.shape_cast %342 : vector<1xf32> to vector<1x1xf32>
    %cst_37 = arith.constant 1.600000e+01 : f32
    %344 = vector.broadcast %cst_37 : f32 to vector<1x1xf32>
    %345 = arith.divf %343, %344 : vector<1x1xf32>
    %cst_38 = arith.constant 9.99999997E-7 : f32
    %346 = vector.broadcast %cst_38 : f32 to vector<1x1xf32>
    %347 = arith.addf %345, %346 : vector<1x1xf32>
    %348 = vector.broadcast %347 : vector<1x1xf32> to vector<16x1xf32>
    %349 = arith.divf %341, %348 : vector<16x1xf32>
    %c0_39 = arith.constant 0 : index
    %c0_40 = arith.constant 0 : index
    %350 = vector.load %arg8[%c0_39, %c0_40] : memref<16x1xf32, #tpu.memory_space<vmem>>, vector<16x1xf32>
    %351 = vector.broadcast %349 : vector<16x1xf32> to vector<16x352xf32>
    %352 = arith.mulf %334, %351 : vector<16x352xf32>
    %353 = vector.broadcast %350 : vector<16x1xf32> to vector<16x352xf32>
    %354 = arith.mulf %353, %352 : vector<16x352xf32>
    %c0_41 = arith.constant 0 : index
    %c0_42 = arith.constant 0 : index
    %355 = vector.load %arg9[%c0_41, %c0_42] : memref<16x1xf32, #tpu.memory_space<vmem>>, vector<16x1xf32>
    %356 = vector.broadcast %355 : vector<16x1xf32> to vector<16x352xf32>
    %357 = arith.addf %354, %356 : vector<16x352xf32>
    %358 = arith.addf %357, %334 : vector<16x352xf32>
    %359 = vector.extract_strided_slice %1 {offsets = [0, 69], sizes = [4, 352], strides = [1, 1]} : vector<4x512xf32> to vector<4x352xf32>
    %c0_43 = arith.constant 0 : index
    %c0_44 = arith.constant 0 : index
    %360 = vector.load %arg10[%c0_43, %c0_44] : memref<8x16xf32, #tpu.memory_space<vmem>>, vector<8x16xf32>
    %cst_45 = arith.constant dense<0.000000e+00> : vector<8x352xf32>
    %361 = tpu.matmul %360, %358, %cst_45 {dimension_numbers = #tpu.dot_dimension_numbers<[1], [0], [0], [1], [0, 0, 1, 1], [], []>} : vector<8x16xf32>, vector<16x352xf32>, vector<8x352xf32> -> vector<8x352xf32>
    %c0_46 = arith.constant 0 : index
    %c0_47 = arith.constant 0 : index
    %362 = vector.load %arg11[%c0_46, %c0_47] : memref<8x4xf32, #tpu.memory_space<vmem>>, vector<8x4xf32>
    %cst_48 = arith.constant dense<0.000000e+00> : vector<8x352xf32>
    %363 = tpu.matmul %362, %359, %cst_48 {dimension_numbers = #tpu.dot_dimension_numbers<[1], [0], [0], [1], [0, 0, 1, 1], [], []>} : vector<8x4xf32>, vector<4x352xf32>, vector<8x352xf32> -> vector<8x352xf32>
    %364 = arith.addf %361, %363 : vector<8x352xf32>
    %c0_49 = arith.constant 0 : index
    %c0_50 = arith.constant 0 : index
    %365 = vector.load %arg12[%c0_49, %c0_50] : memref<8x1xf32, #tpu.memory_space<vmem>>, vector<8x1xf32>
    %366 = vector.broadcast %365 : vector<8x1xf32> to vector<8x352xf32>
    %367 = arith.addf %364, %366 : vector<8x352xf32>
    %c0_51 = arith.constant 0 : index
    %c0_52 = arith.constant 0 : index
    %c0_53 = arith.constant 0 : index
    %368 = vector.load %arg14[%c0_51, %c0_52, %c0_53] : memref<1x8x352xf32, #tpu.memory_space<vmem>>, vector<1x8x352xf32>
    %369 = vector.shape_cast %368 : vector<1x8x352xf32> to vector<8x352xf32>
    %370 = vector.shape_cast %367 : vector<8x352xf32> to vector<1x8x352xf32>
    tpu.vector_store %arg14[%c0_51, %c0_52, %c0_53], %370 {strides = array<i32>} : memref<1x8x352xf32, #tpu.memory_space<vmem>>, vector<1x8x352xf32>,
    return
  }
  func.func @transform_0(%arg0: i32) -> (i32, i32, i32) {
    %c0_i32 = arith.constant 0 : i32
    %c0_i32_0 = arith.constant 0 : i32
    %c0_i32_1 = arith.constant 0 : i32
    return %arg0, %c0_i32, %c0_i32_0 : i32, i32, i32
  }
  func.func @transform_1(%arg0: i32) -> (i32, i32) {
    %c0_i32 = arith.constant 0 : i32
    %c0_i32_0 = arith.constant 0 : i32
    %c0_i32_1 = arith.constant 0 : i32
    return %c0_i32, %c0_i32_0 : i32, i32
  }
  func.func @transform_2(%arg0: i32) -> (i32, i32) {
    %c0_i32 = arith.constant 0 : i32
    %c0_i32_0 = arith.constant 0 : i32
    %c0_i32_1 = arith.constant 0 : i32
    return %c0_i32, %c0_i32_0 : i32, i32
  }
  func.func @transform_3(%arg0: i32) -> (i32, i32) {
    %c0_i32 = arith.constant 0 : i32
    %c0_i32_0 = arith.constant 0 : i32
    %c0_i32_1 = arith.constant 0 : i32
    return %c0_i32, %c0_i32_0 : i32, i32
  }
  func.func @transform_4(%arg0: i32) -> (i32, i32) {
    %c0_i32 = arith.constant 0 : i32
    %c0_i32_0 = arith.constant 0 : i32
    %c0_i32_1 = arith.constant 0 : i32
    return %c0_i32, %c0_i32_0 : i32, i32
  }
  func.func @transform_5(%arg0: i32) -> (i32, i32) {
    %c0_i32 = arith.constant 0 : i32
    %c0_i32_0 = arith.constant 0 : i32
    %c0_i32_1 = arith.constant 0 : i32
    return %c0_i32, %c0_i32_0 : i32, i32
  }
  func.func @transform_6(%arg0: i32) -> (i32, i32) {
    %c0_i32 = arith.constant 0 : i32
    %c0_i32_0 = arith.constant 0 : i32
    %c0_i32_1 = arith.constant 0 : i32
    return %c0_i32, %c0_i32_0 : i32, i32
  }
  func.func @transform_7(%arg0: i32) -> (i32, i32) {
    %c0_i32 = arith.constant 0 : i32
    %c0_i32_0 = arith.constant 0 : i32
    %c0_i32_1 = arith.constant 0 : i32
    return %c0_i32, %c0_i32_0 : i32, i32
  }
  func.func @transform_8(%arg0: i32) -> (i32, i32) {
    %c0_i32 = arith.constant 0 : i32
    %c0_i32_0 = arith.constant 0 : i32
    %c0_i32_1 = arith.constant 0 : i32
    return %c0_i32, %c0_i32_0 : i32, i32
  }
  func.func @transform_9(%arg0: i32) -> (i32, i32) {
    %c0_i32 = arith.constant 0 : i32
    %c0_i32_0 = arith.constant 0 : i32
    %c0_i32_1 = arith.constant 0 : i32
    return %c0_i32, %c0_i32_0 : i32, i32
  }
  func.func @transform_10(%arg0: i32) -> (i32, i32) {
    %c0_i32 = arith.constant 0 : i32
    %c0_i32_0 = arith.constant 0 : i32
    %c0_i32_1 = arith.constant 0 : i32
    return %c0_i32, %c0_i32_0 : i32, i32
  }
  func.func @transform_11(%arg0: i32) -> (i32, i32) {
    %c0_i32 = arith.constant 0 : i32
    %c0_i32_0 = arith.constant 0 : i32
    %c0_i32_1 = arith.constant 0 : i32
    return %c0_i32, %c0_i32_0 : i32, i32
  }
  func.func @transform_12(%arg0: i32) -> (i32, i32) {
    %c0_i32 = arith.constant 0 : i32
    %c0_i32_0 = arith.constant 0 : i32
    %c0_i32_1 = arith.constant 0 : i32
    return %c0_i32, %c0_i32_0 : i32, i32
  }
  func.func @transform_13(%arg0: i32) -> (i32, i32, i32) {
    %c0_i32 = arith.constant 0 : i32
    %c0_i32_0 = arith.constant 0 : i32
    %c0_i32_1 = arith.constant 0 : i32
    return %arg0, %c0_i32, %c0_i32_0 : i32, i32, i32
  }
}

</mosaic_0001>

<llo_original>
// kernel: tpu_custom_call.1
$region0: #{tpu_custom_call.1}
  #allocation0 [shape = 'u32[]', space=smem, size = 0x4, offset = 0x4, fixed_abs, tag = 'smem constant byte address 0x4 - core index']
  #allocation1 [shape = 'u32[72,128]{1,0:T(1,128)}', space=vmem, size = 0x9000, scoped, tag = 'internal scratch']
  %s0 = inlined_call_operand.vmem [shape: f32[2,4,512], index: 0, kind: input, shape index: {}]
  %s1 = inlined_call_operand.vmem [shape: f32[4,49], index: 1, kind: input, shape index: {}]
  %s2 = inlined_call_operand.vmem [shape: f32[4,1], index: 2, kind: input, shape index: {}]
  %s3 = inlined_call_operand.vmem [shape: f32[4,1], index: 3, kind: input, shape index: {}]
  %s4 = inlined_call_operand.vmem [shape: f32[4,1], index: 4, kind: input, shape index: {}]
  %s5 = inlined_call_operand.vmem [shape: f32[16,4], index: 5, kind: input, shape index: {}]
  %s6 = inlined_call_operand.vmem [shape: f32[16,1], index: 6, kind: input, shape index: {}]
  %s7 = inlined_call_operand.vmem [shape: f32[16,1], index: 7, kind: input, shape index: {}]
  %s8 = inlined_call_operand.vmem [shape: f32[16,1], index: 8, kind: input, shape index: {}]
  %s9 = inlined_call_operand.vmem [shape: f32[8,16], index: 9, kind: input, shape index: {}]
  %s10 = inlined_call_operand.vmem [shape: f32[8,4], index: 10, kind: input, shape index: {}]
  %s11 = inlined_call_operand.vmem [shape: f32[8,1], index: 11, kind: input, shape index: {}]
  %s12 = inlined_call_operand.vmem [shape: f32[1,352], index: 12, kind: input, shape index: {}]
  %s13 = inlined_call_operand.hbm [shape: f32[2,8,352], index: 13, kind: output, shape index: {}]
  %s14 = sld [smem:[#allocation0]]
  $region85: #{tpu_custom_call.1} parent=0
    _
  %s16 = ssub.s32 1, %s14
  %s17 = scalar_select 0, %s16, %s14
  $region1: #{tpu_custom_call.1} parent=0
    #allocation2 [shape = 'u8[24576]{0}', space=vmem, size = 0x6000, scoped, tag = 'output window, operand 0']
    #allocation3 [shape = 's32[2]{0}', space=sflag, size = 0x8, scoped, tag = 'scoped memory for tpu_custom_call.1']
    %18 = vsyncpa [#allocation3], 0
    %s19 = scalar_lea.sflag [#allocation3], 1
    %20 = vsyncpa %s19, 0
    loop: start=0, step=1, limit=4
    $region2: #{tpu_custom_call.1} parent=1 // loop_pre_header
      _
    $region3: #{tpu_custom_call.1} parent=1 // loop_header
      %s22 = sphi 0, %s26
      %p23 = scmp.ge.s32.totalorder %s22, 4
      %s32 = sphi 0, %s34
      %s35 = sphi 0, %s32
      %s36 = sphi 0, %s35
      %s52 = sphi 0, %s36
      %s56 = sphi 0, %s56
      %s58 = sphi 0, %s56
      %s59 = sphi 0, %s58
      %s73 = sphi 0, %s59
      %s77 = sphi 0, %s77
      %s79 = sphi 0, %s77
      %s80 = sphi 0, %s79
      %s94 = sphi 0, %s80
      %s98 = sphi 0, %s98
      %s100 = sphi 0, %s98
      %s101 = sphi 0, %s100
      %s115 = sphi 0, %s101
      %s119 = sphi 0, %s119
      %s121 = sphi 0, %s119
      %s122 = sphi 0, %s121
      %s136 = sphi 0, %s122
      %s140 = sphi 0, %s140
      %s142 = sphi 0, %s140
      %s143 = sphi 0, %s142
      %s157 = sphi 0, %s143
      %s161 = sphi 0, %s161
      %s163 = sphi 0, %s161
      %s164 = sphi 0, %s163
      %s178 = sphi 0, %s164
      %s182 = sphi 0, %s182
      %s184 = sphi 0, %s182
      %s185 = sphi 0, %s184
      %s199 = sphi 0, %s185
      %s203 = sphi 0, %s203
      %s205 = sphi 0, %s203
      %s206 = sphi 0, %s205
      %s220 = sphi 0, %s206
      %s224 = sphi 0, %s224
      %s226 = sphi 0, %s224
      %s227 = sphi 0, %s226
      %s241 = sphi 0, %s227
      %s245 = sphi 0, %s245
      %s247 = sphi 0, %s245
      %s248 = sphi 0, %s247
      %s262 = sphi 0, %s248
      %s266 = sphi 0, %s266
      %s268 = sphi 0, %s266
      %s269 = sphi 0, %s268
      %s283 = sphi 0, %s269
      %s287 = sphi 0, %s287
      %s289 = sphi 0, %s287
      %s290 = sphi 0, %s289
      %s304 = sphi 0, %s290
      %s310 = sphi 0, %s312
      %s313 = sphi 0, %s310
      %s314 = sphi 0, %s313
      %s330 = sphi 0, %s314
    $region4: #{tpu_custom_call.1} parent=1 // loop_header_branch
      %25 = sbr.rel (%p23) target = $region8
    $region5: #{tpu_custom_call.1} parent=1 // loop_body
      %s27 = ssub.s32 %s22, 1
      %s28 = ssub.s32 %s22, 2
      %s29 = sadd.s32 %s22, 1
      %s30 = ssub.s32 %s22, %s29
      %p31 = scmp.eq.s32.totalorder %s30, 0
      %s33 = sadd.s32 %s32, 1
      %s34 = scalar_select %p31, %s32, %s33
      %p37 = pneg %p31
      %p38 = scmp.eq.s32.totalorder %s22, 1
      %p39 = por %p37, %p38
      %p40 = scmp.ne.s32.totalorder %s32, %s35
      %p41 = scmp.eq.s32.totalorder %s22, 0
      %p42 = por %p40, %p41
      %p43 = scmp.ne.s32.totalorder %s32, %s35
      %p44 = scmp.eq.s32.totalorder %s27, 1
      %p45 = por %p43, %p44
      %p46 = scmp.ne.s32.totalorder %s35, %s36
      %p47 = scmp.eq.s32.totalorder %s27, 0
      %p48 = por %p46, %p47
      %p49 = scmp.ne.s32.totalorder %s35, %s36
      %p50 = scmp.eq.s32.totalorder %s28, 1
      %p51 = por %p49, %p50
      %p53 = scmp.ne.s32.totalorder %s36, %s52
      %p54 = scmp.eq.s32.totalorder %s28, 0
      %p55 = por %p53, %p54
      %s57 = sadd.s32 %s56, 1
      %p60 = scmp.eq.s32.totalorder %s22, 1
      %p61 = scmp.ne.s32.totalorder %s56, %s58
      %p62 = scmp.eq.s32.totalorder %s22, 0
      %p63 = por %p61, %p62
      %p64 = scmp.ne.s32.totalorder %s56, %s58
      %p65 = scmp.eq.s32.totalorder %s27, 1
      %p66 = por %p64, %p65
      %p67 = scmp.ne.s32.totalorder %s58, %s59
      %p68 = scmp.eq.s32.totalorder %s27, 0
      %p69 = por %p67, %p68
      %p70 = scmp.ne.s32.totalorder %s58, %s59
      %p71 = scmp.eq.s32.totalorder %s28, 1
      %p72 = por %p70, %p71
      %p74 = scmp.ne.s32.totalorder %s59, %s73
      %p75 = scmp.eq.s32.totalorder %s28, 0
      %p76 = por %p74, %p75
      %s78 = sadd.s32 %s77, 1
      %p81 = scmp.eq.s32.totalorder %s22, 1
      %p82 = scmp.ne.s32.totalorder %s77, %s79
      %p83 = scmp.eq.s32.totalorder %s22, 0
      %p84 = por %p82, %p83
      %p85 = scmp.ne.s32.totalorder %s77, %s79
      %p86 = scmp.eq.s32.totalorder %s27, 1
      %p87 = por %p85, %p86
      %p88 = scmp.ne.s32.totalorder %s79, %s80
      %p89 = scmp.eq.s32.totalorder %s27, 0
      %p90 = por %p88, %p89
      %p91 = scmp.ne.s32.totalorder %s79, %s80
      %p92 = scmp.eq.s32.totalorder %s28, 1
      %p93 = por %p91, %p92
      %p95 = scmp.ne.s32.totalorder %s80, %s94
      %p96 = scmp.eq.s32.totalorder %s28, 0
      %p97 = por %p95, %p96
      %s99 = sadd.s32 %s98, 1
      %p102 = scmp.eq.s32.totalorder %s22, 1
      %p103 = scmp.ne.s32.totalorder %s98, %s100
      %p104 = scmp.eq.s32.totalorder %s22, 0
      %p105 = por %p103, %p104
      %p106 = scmp.ne.s32.totalorder %s98, %s100
      %p107 = scmp.eq.s32.totalorder %s27, 1
      %p108 = por %p106, %p107
      %p109 = scmp.ne.s32.totalorder %s100, %s101
      %p110 = scmp.eq.s32.totalorder %s27, 0
      %p111 = por %p109, %p110
      %p112 = scmp.ne.s32.totalorder %s100, %s101
      %p113 = scmp.eq.s32.totalorder %s28, 1
      %p114 = por %p112, %p113
      %p116 = scmp.ne.s32.totalorder %s101, %s115
      %p117 = scmp.eq.s32.totalorder %s28, 0
      %p118 = por %p116, %p117
      %s120 = sadd.s32 %s119, 1
      %p123 = scmp.eq.s32.totalorder %s22, 1
      %p124 = scmp.ne.s32.totalorder %s119, %s121
      %p125 = scmp.eq.s32.totalorder %s22, 0
      %p126 = por %p124, %p125
      %p127 = scmp.ne.s32.totalorder %s119, %s121
      %p128 = scmp.eq.s32.totalorder %s27, 1
      %p129 = por %p127, %p128
      %p130 = scmp.ne.s32.totalorder %s121, %s122
      %p131 = scmp.eq.s32.totalorder %s27, 0
      %p132 = por %p130, %p131
      %p133 = scmp.ne.s32.totalorder %s121, %s122
      %p134 = scmp.eq.s32.totalorder %s28, 1
      %p135 = por %p133, %p134
      %p137 = scmp.ne.s32.totalorder %s122, %s136
      %p138 = scmp.eq.s32.totalorder %s28, 0
      %p139 = por %p137, %p138
      %s141 = sadd.s32 %s140, 1
      %p144 = scmp.eq.s32.totalorder %s22, 1
      %p145 = scmp.ne.s32.totalorder %s140, %s142
      %p146 = scmp.eq.s32.totalorder %s22, 0
      %p147 = por %p145, %p146
      %p148 = scmp.ne.s32.totalorder %s140, %s142
      %p149 = scmp.eq.s32.totalorder %s27, 1
      %p150 = por %p148, %p149
      %p151 = scmp.ne.s32.totalorder %s142, %s143
      %p152 = scmp.eq.s32.totalorder %s27, 0
      %p153 = por %p151, %p152
      %p154 = scmp.ne.s32.totalorder %s142, %s143
      %p155 = scmp.eq.s32.totalorder %s28, 1
      %p156 = por %p154, %p155
      %p158 = scmp.ne.s32.totalorder %s143, %s157
      %p159 = scmp.eq.s32.totalorder %s28, 0
      %p160 = por %p158, %p159
      %s162 = sadd.s32 %s161, 1
      %p165 = scmp.eq.s32.totalorder %s22, 1
      %p166 = scmp.ne.s32.totalorder %s161, %s163
      %p167 = scmp.eq.s32.totalorder %s22, 0
      %p168 = por %p166, %p167
      %p169 = scmp.ne.s32.totalorder %s161, %s163
      %p170 = scmp.eq.s32.totalorder %s27, 1
      %p171 = por %p169, %p170
      %p172 = scmp.ne.s32.totalorder %s163, %s164
      %p173 = scmp.eq.s32.totalorder %s27, 0
      %p174 = por %p172, %p173
      %p175 = scmp.ne.s32.totalorder %s163, %s164
      %p176 = scmp.eq.s32.totalorder %s28, 1
      %p177 = por %p175, %p176
      %p179 = scmp.ne.s32.totalorder %s164, %s178
      %p180 = scmp.eq.s32.totalorder %s28, 0
      %p181 = por %p179, %p180
      %s183 = sadd.s32 %s182, 1
      %p186 = scmp.eq.s32.totalorder %s22, 1
      %p187 = scmp.ne.s32.totalorder %s182, %s184
      %p188 = scmp.eq.s32.totalorder %s22, 0
      %p189 = por %p187, %p188
      %p190 = scmp.ne.s32.totalorder %s182, %s184
      %p191 = scmp.eq.s32.totalorder %s27, 1
      %p192 = por %p190, %p191
      %p193 = scmp.ne.s32.totalorder %s184, %s185
      %p194 = scmp.eq.s32.totalorder %s27, 0
      %p195 = por %p193, %p194
      %p196 = scmp.ne.s32.totalorder %s184, %s185
      %p197 = scmp.eq.s32.totalorder %s28, 1
      %p198 = por %p196, %p197
      %p200 = scmp.ne.s32.totalorder %s185, %s199
      %p201 = scmp.eq.s32.totalorder %s28, 0
      %p202 = por %p200, %p201
      %s204 = sadd.s32 %s203, 1
      %p207 = scmp.eq.s32.totalorder %s22, 1
      %p208 = scmp.ne.s32.totalorder %s203, %s205
      %p209 = scmp.eq.s32.totalorder %s22, 0
      %p210 = por %p208, %p209
      %p211 = scmp.ne.s32.totalorder %s203, %s205
      %p212 = scmp.eq.s32.totalorder %s27, 1
      %p213 = por %p211, %p212
      %p214 = scmp.ne.s32.totalorder %s205, %s206
      %p215 = scmp.eq.s32.totalorder %s27, 0
      %p216 = por %p214, %p215
      %p217 = scmp.ne.s32.totalorder %s205, %s206
      %p218 = scmp.eq.s32.totalorder %s28, 1
      %p219 = por %p217, %p218
      %p221 = scmp.ne.s32.totalorder %s206, %s220
      %p222 = scmp.eq.s32.totalorder %s28, 0
      %p223 = por %p221, %p222
      %s225 = sadd.s32 %s224, 1
      %p228 = scmp.eq.s32.totalorder %s22, 1
      %p229 = scmp.ne.s32.totalorder %s224, %s226
      %p230 = scmp.eq.s32.totalorder %s22, 0
      %p231 = por %p229, %p230
      %p232 = scmp.ne.s32.totalorder %s224, %s226
      %p233 = scmp.eq.s32.totalorder %s27, 1
      %p234 = por %p232, %p233
      %p235 = scmp.ne.s32.totalorder %s226, %s227
      %p236 = scmp.eq.s32.totalorder %s27, 0
      %p237 = por %p235, %p236
      %p238 = scmp.ne.s32.totalorder %s226, %s227
      %p239 = scmp.eq.s32.totalorder %s28, 1
      %p240 = por %p238, %p239
      %p242 = scmp.ne.s32.totalorder %s227, %s241
      %p243 = scmp.eq.s32.totalorder %s28, 0
      %p244 = por %p242, %p243
      %s246 = sadd.s32 %s245, 1
      %p249 = scmp.eq.s32.totalorder %s22, 1
      %p250 = scmp.ne.s32.totalorder %s245, %s247
      %p251 = scmp.eq.s32.totalorder %s22, 0
      %p252 = por %p250, %p251
      %p253 = scmp.ne.s32.totalorder %s245, %s247
      %p254 = scmp.eq.s32.totalorder %s27, 1
      %p255 = por %p253, %p254
      %p256 = scmp.ne.s32.totalorder %s247, %s248
      %p257 = scmp.eq.s32.totalorder %s27, 0
      %p258 = por %p256, %p257
      %p259 = scmp.ne.s32.totalorder %s247, %s248
      %p260 = scmp.eq.s32.totalorder %s28, 1
      %p261 = por %p259, %p260
      %p263 = scmp.ne.s32.totalorder %s248, %s262
      %p264 = scmp.eq.s32.totalorder %s28, 0
      %p265 = por %p263, %p264
      %s267 = sadd.s32 %s266, 1
      %p270 = scmp.eq.s32.totalorder %s22, 1
      %p271 = scmp.ne.s32.totalorder %s266, %s268
      %p272 = scmp.eq.s32.totalorder %s22, 0
      %p273 = por %p271, %p272
      %p274 = scmp.ne.s32.totalorder %s266, %s268
      %p275 = scmp.eq.s32.totalorder %s27, 1
      %p276 = por %p274, %p275
      %p277 = scmp.ne.s32.totalorder %s268, %s269
      %p278 = scmp.eq.s32.totalorder %s27, 0
      %p279 = por %p277, %p278
      %p280 = scmp.ne.s32.totalorder %s268, %s269
      %p281 = scmp.eq.s32.totalorder %s28, 1
      %p282 = por %p280, %p281
      %p284 = scmp.ne.s32.totalorder %s269, %s283
      %p285 = scmp.eq.s32.totalorder %s28, 0
      %p286 = por %p284, %p285
      %s288 = sadd.s32 %s287, 1
      %p291 = scmp.eq.s32.totalorder %s22, 1
      %p292 = scmp.ne.s32.totalorder %s287, %s289
      %p293 = scmp.eq.s32.totalorder %s22, 0
      %p294 = por %p292, %p293
      %p295 = scmp.ne.s32.totalorder %s287, %s289
      %p296 = scmp.eq.s32.totalorder %s27, 1
      %p297 = por %p295, %p296
      %p298 = scmp.ne.s32.totalorder %s289, %s290
      %p299 = scmp.eq.s32.totalorder %s27, 0
      %p300 = por %p298, %p299
      %p301 = scmp.ne.s32.totalorder %s289, %s290
      %p302 = scmp.eq.s32.totalorder %s28, 1
      %p303 = por %p301, %p302
      %p305 = scmp.ne.s32.totalorder %s290, %s304
      %p306 = scmp.eq.s32.totalorder %s28, 0
      %p307 = por %p305, %p306
      %s308 = ssub.s32 %s22, %s29
      %p309 = scmp.eq.s32.totalorder %s308, 0
      %s311 = sadd.s32 %s310, 1
      %s312 = scalar_select %p309, %s310, %s311
      %p315 = pneg %p309
      %p316 = scmp.eq.s32.totalorder %s22, 1
      %p317 = por %p315, %p316
      %p318 = scmp.ne.s32.totalorder %s310, %s313
      %p319 = scmp.eq.s32.totalorder %s22, 0
      %p320 = por %p318, %p319
      %p321 = scmp.ne.s32.totalorder %s310, %s313
      %p322 = scmp.eq.s32.totalorder %s27, 1
      %p323 = por %p321, %p322
      %p324 = scmp.ne.s32.totalorder %s313, %s314
      %p325 = scmp.eq.s32.totalorder %s27, 0
      %p326 = por %p324, %p325
      %p327 = scmp.ne.s32.totalorder %s313, %s314
      %p328 = scmp.eq.s32.totalorder %s28, 1
      %p329 = por %p327, %p328
      %p331 = scmp.ne.s32.totalorder %s314, %s330
      %p332 = scmp.eq.s32.totalorder %s28, 0
      %p333 = por %p331, %p332
      %p334 = scmp.le.s32.totalorder 1, %s22
      %p335 = scmp.lt.s32.totalorder %s22, 3
      %p336 = pnand %p334, %p335
      %p337 = pneg %p336
      // Predicated region
      $region9: #{tpu_custom_call.1} parent=5 // pred_check
        _
      $region10: #{tpu_custom_call.1} parent=5 // pred_check_branch
        %339 = sbr.rel (%p336) target = $region12
      $region11: #{tpu_custom_call.1} parent=5 // pred_region
        %s340 = ssub.s32 %s22, 1
        // Predicated region
        $region13: #{tpu_custom_call.1} parent=11 // pred_check
          %p341 = pneg %p69
        $region14: #{tpu_custom_call.1} parent=11 // pred_check_branch
          %343 = sbr.rel (%p341) target = $region16
        $region15: #{tpu_custom_call.1} parent=11 // pred_region
          _
        $region16: #{tpu_custom_call.1} parent=11 // pred_fallthru
          _
        // Predicated region
        $region17: #{tpu_custom_call.1} parent=11 // pred_check
          %p344 = pneg %p90
        $region18: #{tpu_custom_call.1} parent=11 // pred_check_branch
          %346 = sbr.rel (%p344) target = $region20
        $region19: #{tpu_custom_call.1} parent=11 // pred_region
          _
        $region20: #{tpu_custom_call.1} parent=11 // pred_fallthru
          _
        // Predicated region
        $region21: #{tpu_custom_call.1} parent=11 // pred_check
          %p347 = pneg %p111
        $region22: #{tpu_custom_call.1} parent=11 // pred_check_branch
          %349 = sbr.rel (%p347) target = $region24
        $region23: #{tpu_custom_call.1} parent=11 // pred_region
          _
        $region24: #{tpu_custom_call.1} parent=11 // pred_fallthru
          _
        // Predicated region
        $region25: #{tpu_custom_call.1} parent=11 // pred_check
          %p350 = pneg %p132
        $region26: #{tpu_custom_call.1} parent=11 // pred_check_branch
          %352 = sbr.rel (%p350) target = $region28
        $region27: #{tpu_custom_call.1} parent=11 // pred_region
          _
        $region28: #{tpu_custom_call.1} parent=11 // pred_fallthru
          _
        // Predicated region
        $region29: #{tpu_custom_call.1} parent=11 // pred_check
          %p353 = pneg %p153
        $region30: #{tpu_custom_call.1} parent=11 // pred_check_branch
          %355 = sbr.rel (%p353) target = $region32
        $region31: #{tpu_custom_call.1} parent=11 // pred_region
          _
        $region32: #{tpu_custom_call.1} parent=11 // pred_fallthru
          _
        // Predicated region
        $region33: #{tpu_custom_call.1} parent=11 // pred_check
          %p356 = pneg %p174
        $region34: #{tpu_custom_call.1} parent=11 // pred_check_branch
          %358 = sbr.rel (%p356) target = $region36
        $region35: #{tpu_custom_call.1} parent=11 // pred_region
          _
        $region36: #{tpu_custom_call.1} parent=11 // pred_fallthru
          _
        // Predicated region
        $region37: #{tpu_custom_call.1} parent=11 // pred_check
          %p359 = pneg %p195
        $region38: #{tpu_custom_call.1} parent=11 // pred_check_branch
          %361 = sbr.rel (%p359) target = $region40
        $region39: #{tpu_custom_call.1} parent=11 // pred_region
          _
        $region40: #{tpu_custom_call.1} parent=11 // pred_fallthru
          _
        // Predicated region
        $region41: #{tpu_custom_call.1} parent=11 // pred_check
          %p362 = pneg %p216
        $region42: #{tpu_custom_call.1} parent=11 // pred_check_branch
          %364 = sbr.rel (%p362) target = $region44
        $region43: #{tpu_custom_call.1} parent=11 // pred_region
          _
        $region44: #{tpu_custom_call.1} parent=11 // pred_fallthru
          _
        // Predicated region
        $region45: #{tpu_custom_call.1} parent=11 // pred_check
          %p365 = pneg %p237
        $region46: #{tpu_custom_call.1} parent=11 // pred_check_branch
          %367 = sbr.rel (%p365) target = $region48
        $region47: #{tpu_custom_call.1} parent=11 // pred_region
          _
        $region48: #{tpu_custom_call.1} parent=11 // pred_fallthru
          _
        // Predicated region
        $region49: #{tpu_custom_call.1} parent=11 // pred_check
          %p368 = pneg %p258
        $region50: #{tpu_custom_call.1} parent=11 // pred_check_branch
          %370 = sbr.rel (%p368) target = $region52
        $region51: #{tpu_custom_call.1} parent=11 // pred_region
          _
        $region52: #{tpu_custom_call.1} parent=11 // pred_fallthru
          _
        // Predicated region
        $region53: #{tpu_custom_call.1} parent=11 // pred_check
          %p371 = pneg %p279
        $region54: #{tpu_custom_call.1} parent=11 // pred_check_branch
          %373 = sbr.rel (%p371) target = $region56
        $region55: #{tpu_custom_call.1} parent=11 // pred_region
          _
        $region56: #{tpu_custom_call.1} parent=11 // pred_fallthru
          _
        // Predicated region
        $region57: #{tpu_custom_call.1} parent=11 // pred_check
          %p374 = pneg %p300
        $region58: #{tpu_custom_call.1} parent=11 // pred_check_branch
          %376 = sbr.rel (%p374) target = $region60
        $region59: #{tpu_custom_call.1} parent=11 // pred_region
          _
        $region60: #{tpu_custom_call.1} parent=11 // pred_fallthru
          _
      $region12: #{tpu_custom_call.1} parent=5 // pred_fallthru
        _
      %p377 = scmp.lt.s32.totalorder %s22, 2
      // Predicated region
      $region61: #{tpu_custom_call.1} parent=5 // pred_check
        %p378 = pneg %p377
      $region62: #{tpu_custom_call.1} parent=5 // pred_check_branch
        %380 = sbr.rel (%p378) target = $region64
      $region63: #{tpu_custom_call.1} parent=5 // pred_region
        // Predicated region
        $region65: #{tpu_custom_call.1} parent=63 // pred_check
          %p381 = pneg %p42
        $region66: #{tpu_custom_call.1} parent=63 // pred_check_branch
          %383 = sbr.rel (%p381) target = $region68
        $region67: #{tpu_custom_call.1} parent=63 // pred_region
          %p384 = scmp.lt.s32.totalorder %s22, 1
          %s385 = scalar_select %p384, %s22, 1
          %s386 = smul.addr %s385, 4
          %s387 = smul.addr %s386, 4
          %s388 = scalar_lea.vmem %s0, %s387
        $region68: #{tpu_custom_call.1} parent=63 // pred_fallthru
          _
      $region64: #{tpu_custom_call.1} parent=5 // pred_fallthru
        _
      %p389 = scmp.le.s32.totalorder 1, %s22
      %p390 = scmp.lt.s32.totalorder %s22, 3
      %p391 = pnand %p389, %p390
      %p392 = pneg %p391
      // Predicated region
      $region69: #{tpu_custom_call.1} parent=5 // pred_check
        _
      $region70: #{tpu_custom_call.1} parent=5 // pred_check_branch
        %394 = sbr.rel (%p391) target = $region72
      $region71: #{tpu_custom_call.1} parent=5 // pred_region
        %s395 = ssub.s32 %s22, 1
        %p396 = scmp.lt.s32.totalorder %s27, 1
        %s397 = scalar_select %p396, %s27, 1
        %s398 = smul.addr %s397, 4
        %s399 = smul.addr %s398, 4
        %s400 = scalar_lea.vmem %s0, %s399
        %p401 = pneg %p48
        %p402 = pneg %p45
        %p403 = pneg %p69
        %p404 = pneg %p66
        %p405 = pneg %p90
        %p406 = pneg %p87
        %p407 = pneg %p111
        %p408 = pneg %p108
        %p409 = pneg %p132
        %p410 = pneg %p129
        %p411 = pneg %p153
        %p412 = pneg %p150
        %p413 = pneg %p174
        %p414 = pneg %p171
        %p415 = pneg %p195
        %p416 = pneg %p192
        %p417 = pneg %p216
        %p418 = pneg %p213
        %p419 = pneg %p237
        %p420 = pneg %p234
        %p421 = pneg %p258
        %p422 = pneg %p255
        %p423 = pneg %p279
        %p424 = pneg %p276
        %p425 = pneg %p300
        %p426 = pneg %p297
        %p427 = pneg %p326
        %p428 = pneg %p323
        %s429 = sand.u32 %s313, 1
        %s430 = scalar_lea.sflag [#allocation3], %s429
        %s431 = sand.u32 %s313, 1
        %s432 = smul.addr %s431, 24
        %s433 = scalar_lea.vmem [#allocation2], %s432
        %p434 = scmp.lt.s32.totalorder %s27, 1
        %s435 = scalar_select %p434, %s27, 1
        %s436 = smul.addr %s435, 4
        %s437 = smul.addr %s436, 4
        %s438 = scalar_lea.vmem %s0, %s437
        %v439 = vld [vmem:[%s438] sm:$0xff]
        %v440 = vld [vmem:[%s438 + $0x8] sm:$0xff]
        %v441 = vld [vmem:[%s1] sm:$0xf]
        %443 = vset.pattern.permute.xlu0 0
        %444 = vperm.xlu0 %443, %v441
        %v445 = vpop.permute.xlu0 %444
        %v447 = vunpack.c.l.s4 839922192
        %v448 = vunpack.c.0.s8 %v447
        %v449 = vperm.slane %v445, %v448
        %v451 = vmul.f32 %v439, %v449
        %v452 = vmul.f32 %v440, %v449
        %453 = vset.pattern.permute.xlu0 1
        %454 = vperm.xlu0 %453, %v441
        %v455 = vpop.permute.xlu0 %454
        %v457 = vunpack.c.l.s4 839922192
        %v458 = vunpack.c.0.s8 %v457
        %v459 = vperm.slane %v455, %v458
        %v461 = vmul.f32 %v439, %v459
        %v462 = vmul.f32 %v440, %v459
        %465 = vrot.lane.b32.xlu0 %v461, 127
        %v466 = vpop.permute.xlu0 %465
        %467 = vrot.lane.b32.xlu0 %v462, 127
        %v468 = vpop.permute.xlu0 %467
        %v469 = vrot.slane %v466, 4
        %v470 = vrot.slane %v468, 4
        %vm471 = vcmask 1043456
        %v472 = vsel %vm471, %v469, %v470
        %vm473 = vcmask 1039360
        %v474 = vsel %vm473, %v466, %v472
        %v477 = vadd.f32 %v451, %v474
        %v478 = vadd.f32 %v452, %v468
        %479 = vset.pattern.permute.xlu0 2
        %480 = vperm.xlu0 %479, %v441
        %v481 = vpop.permute.xlu0 %480
        %v483 = vunpack.c.l.s4 839922192
        %v484 = vunpack.c.0.s8 %v483
        %v485 = vperm.slane %v481, %v484
        %v487 = vmul.f32 %v439, %v485
        %v488 = vmul.f32 %v440, %v485
        %491 = vrot.lane.b32.xlu0 %v487, 126
        %v492 = vpop.permute.xlu0 %491
        %493 = vrot.lane.b32.xlu0 %v488, 126
        %v494 = vpop.permute.xlu0 %493
        %v495 = vrot.slane %v492, 4
        %v496 = vrot.slane %v494, 4
        %v497 = vsel %vm471, %v495, %v496
        %vm498 = vcmask 1031168
        %v499 = vsel %vm498, %v492, %v497
        %v502 = vadd.f32 %v477, %v499
        %v503 = vadd.f32 %v478, %v494
        %504 = vset.pattern.permute.xlu0 3
        %505 = vperm.xlu0 %504, %v441
        %v506 = vpop.permute.xlu0 %505
        %v508 = vunpack.c.l.s4 839922192
        %v509 = vunpack.c.0.s8 %v508
        %v510 = vperm.slane %v506, %v509
        %v512 = vmul.f32 %v439, %v510
        %v513 = vmul.f32 %v440, %v510
        %516 = vrot.lane.b32.xlu0 %v512, 125
        %v517 = vpop.permute.xlu0 %516
        %518 = vrot.lane.b32.xlu0 %v513, 125
        %v519 = vpop.permute.xlu0 %518
        %v520 = vrot.slane %v517, 4
        %v521 = vrot.slane %v519, 4
        %v522 = vsel %vm471, %v520, %v521
        %vm523 = vcmask 1022976
        %v524 = vsel %vm523, %v517, %v522
        %v527 = vadd.f32 %v502, %v524
        %v528 = vadd.f32 %v503, %v519
        %529 = vset.pattern.permute.xlu0 4
        %530 = vperm.xlu0 %529, %v441
        %v531 = vpop.permute.xlu0 %530
        %v533 = vunpack.c.l.s4 839922192
        %v534 = vunpack.c.0.s8 %v533
        %v535 = vperm.slane %v531, %v534
        %v537 = vmul.f32 %v439, %v535
        %v538 = vmul.f32 %v440, %v535
        %541 = vrot.lane.b32.xlu0 %v537, 124
        %v542 = vpop.permute.xlu0 %541
        %543 = vrot.lane.b32.xlu0 %v538, 124
        %v544 = vpop.permute.xlu0 %543
        %v545 = vrot.slane %v542, 4
        %v546 = vrot.slane %v544, 4
        %v547 = vsel %vm471, %v545, %v546
        %vm548 = vcmask 1014784
        %v549 = vsel %vm548, %v542, %v547
        %v552 = vadd.f32 %v527, %v549
        %v553 = vadd.f32 %v528, %v544
        %554 = vset.pattern.permute.xlu0 5
        %555 = vperm.xlu0 %554, %v441
        %v556 = vpop.permute.xlu0 %555
        %v558 = vunpack.c.l.s4 839922192
        %v559 = vunpack.c.0.s8 %v558
        %v560 = vperm.slane %v556, %v559
        %v562 = vmul.f32 %v439, %v560
        %v563 = vmul.f32 %v440, %v560
        %566 = vrot.lane.b32.xlu0 %v562, 123
        %v567 = vpop.permute.xlu0 %566
        %568 = vrot.lane.b32.xlu0 %v563, 123
        %v569 = vpop.permute.xlu0 %568
        %v570 = vrot.slane %v567, 4
        %v571 = vrot.slane %v569, 4
        %v572 = vsel %vm471, %v570, %v571
        %vm573 = vcmask 1006592
        %v574 = vsel %vm573, %v567, %v572
        %v577 = vadd.f32 %v552, %v574
        %v578 = vadd.f32 %v553, %v569
        %579 = vset.pattern.permute.xlu0 6
        %580 = vperm.xlu0 %579, %v441
        %v581 = vpop.permute.xlu0 %580
        %v583 = vunpack.c.l.s4 839922192
        %v584 = vunpack.c.0.s8 %v583
        %v585 = vperm.slane %v581, %v584
        %v587 = vmul.f32 %v439, %v585
        %v588 = vmul.f32 %v440, %v585
        %591 = vrot.lane.b32.xlu0 %v587, 122
        %v592 = vpop.permute.xlu0 %591
        %593 = vrot.lane.b32.xlu0 %v588, 122
        %v594 = vpop.permute.xlu0 %593
        %v595 = vrot.slane %v592, 4
        %v596 = vrot.slane %v594, 4
        %v597 = vsel %vm471, %v595, %v596
        %vm598 = vcmask 998400
        %v599 = vsel %vm598, %v592, %v597
        %v602 = vadd.f32 %v577, %v599
        %v603 = vadd.f32 %v578, %v594
        %604 = vset.pattern.permute.xlu0 7
        %605 = vperm.xlu0 %604, %v441
        %v606 = vpop.permute.xlu0 %605
        %v608 = vunpack.c.l.s4 839922192
        %v609 = vunpack.c.0.s8 %v608
        %v610 = vperm.slane %v606, %v609
        %v612 = vmul.f32 %v439, %v610
        %v613 = vmul.f32 %v440, %v610
        %616 = vrot.lane.b32.xlu0 %v612, 106
        %v617 = vpop.permute.xlu0 %616
        %618 = vrot.lane.b32.xlu0 %v613, 106
        %v619 = vpop.permute.xlu0 %618
        %v620 = vrot.slane %v617, 4
        %v621 = vrot.slane %v619, 4
        %v622 = vsel %vm471, %v620, %v621
        %vm623 = vcmask 867328
        %v624 = vsel %vm623, %v617, %v622
        %v627 = vadd.f32 %v602, %v624
        %v628 = vadd.f32 %v603, %v619
        %629 = vset.pattern.permute.xlu0 8
        %630 = vperm.xlu0 %629, %v441
        %v631 = vpop.permute.xlu0 %630
        %v633 = vunpack.c.l.s4 839922192
        %v634 = vunpack.c.0.s8 %v633
        %v635 = vperm.slane %v631, %v634
        %v637 = vmul.f32 %v439, %v635
        %v638 = vmul.f32 %v440, %v635
        %641 = vrot.lane.b32.xlu0 %v637, 105
        %v642 = vpop.permute.xlu0 %641
        %643 = vrot.lane.b32.xlu0 %v638, 105
        %v644 = vpop.permute.xlu0 %643
        %v645 = vrot.slane %v642, 4
        %v646 = vrot.slane %v644, 4
        %v647 = vsel %vm471, %v645, %v646
        %vm648 = vcmask 859136
        %v649 = vsel %vm648, %v642, %v647
        %v652 = vadd.f32 %v627, %v649
        %v653 = vadd.f32 %v628, %v644
        %654 = vset.pattern.permute.xlu0 9
        %655 = vperm.xlu0 %654, %v441
        %v656 = vpop.permute.xlu0 %655
        %v658 = vunpack.c.l.s4 839922192
        %v659 = vunpack.c.0.s8 %v658
        %v660 = vperm.slane %v656, %v659
        %v662 = vmul.f32 %v439, %v660
        %v663 = vmul.f32 %v440, %v660
        %666 = vrot.lane.b32.xlu0 %v662, 104
        %v667 = vpop.permute.xlu0 %666
        %668 = vrot.lane.b32.xlu0 %v663, 104
        %v669 = vpop.permute.xlu0 %668
        %v670 = vrot.slane %v667, 4
        %v671 = vrot.slane %v669, 4
        %v672 = vsel %vm471, %v670, %v671
        %vm673 = vcmask 850944
        %v674 = vsel %vm673, %v667, %v672
        %v677 = vadd.f32 %v652, %v674
        %v678 = vadd.f32 %v653, %v669
        %679 = vset.pattern.permute.xlu0 10
        %680 = vperm.xlu0 %679, %v441
        %v681 = vpop.permute.xlu0 %680
        %v683 = vunpack.c.l.s4 839922192
        %v684 = vunpack.c.0.s8 %v683
        %v685 = vperm.slane %v681, %v684
        %v687 = vmul.f32 %v439, %v685
        %v688 = vmul.f32 %v440, %v685
        %691 = vrot.lane.b32.xlu0 %v687, 103
        %v692 = vpop.permute.xlu0 %691
        %693 = vrot.lane.b32.xlu0 %v688, 103
        %v694 = vpop.permute.xlu0 %693
        %v695 = vrot.slane %v692, 4
        %v696 = vrot.slane %v694, 4
        %v697 = vsel %vm471, %v695, %v696
        %vm698 = vcmask 842752
        %v699 = vsel %vm698, %v692, %v697
        %v702 = vadd.f32 %v677, %v699
        %v703 = vadd.f32 %v678, %v694
        %704 = vset.pattern.permute.xlu0 11
        %705 = vperm.xlu0 %704, %v441
        %v706 = vpop.permute.xlu0 %705
        %v708 = vunpack.c.l.s4 839922192
        %v709 = vunpack.c.0.s8 %v708
        %v710 = vperm.slane %v706, %v709
        %v712 = vmul.f32 %v439, %v710
        %v713 = vmul.f32 %v440, %v710
        %716 = vrot.lane.b32.xlu0 %v712, 102
        %v717 = vpop.permute.xlu0 %716
        %718 = vrot.lane.b32.xlu0 %v713, 102
        %v719 = vpop.permute.xlu0 %718
        %v720 = vrot.slane %v717, 4
        %v721 = vrot.slane %v719, 4
        %v722 = vsel %vm471, %v720, %v721
        %vm723 = vcmask 834560
        %v724 = vsel %vm723, %v717, %v722
        %v727 = vadd.f32 %v702, %v724
        %v728 = vadd.f32 %v703, %v719
        %729 = vset.pattern.permute.xlu0 12
        %730 = vperm.xlu0 %729, %v441
        %v731 = vpop.permute.xlu0 %730
        %v733 = vunpack.c.l.s4 839922192
        %v734 = vunpack.c.0.s8 %v733
        %v735 = vperm.slane %v731, %v734
        %v737 = vmul.f32 %v439, %v735
        %v738 = vmul.f32 %v440, %v735
        %741 = vrot.lane.b32.xlu0 %v737, 101
        %v742 = vpop.permute.xlu0 %741
        %743 = vrot.lane.b32.xlu0 %v738, 101
        %v744 = vpop.permute.xlu0 %743
        %v745 = vrot.slane %v742, 4
        %v746 = vrot.slane %v744, 4
        %v747 = vsel %vm471, %v745, %v746
        %vm748 = vcmask 826368
        %v749 = vsel %vm748, %v742, %v747
        %v752 = vadd.f32 %v727, %v749
        %v753 = vadd.f32 %v728, %v744
        %754 = vset.pattern.permute.xlu0 13
        %755 = vperm.xlu0 %754, %v441
        %v756 = vpop.permute.xlu0 %755
        %v758 = vunpack.c.l.s4 839922192
        %v759 = vunpack.c.0.s8 %v758
        %v760 = vperm.slane %v756, %v759
        %v762 = vmul.f32 %v439, %v760
        %v763 = vmul.f32 %v440, %v760
        %766 = vrot.lane.b32.xlu0 %v762, 100
        %v767 = vpop.permute.xlu0 %766
        %768 = vrot.lane.b32.xlu0 %v763, 100
        %v769 = vpop.permute.xlu0 %768
        %v770 = vrot.slane %v767, 4
        %v771 = vrot.slane %v769, 4
        %v772 = vsel %vm471, %v770, %v771
        %vm773 = vcmask 818176
        %v774 = vsel %vm773, %v767, %v772
        %v777 = vadd.f32 %v752, %v774
        %v778 = vadd.f32 %v753, %v769
        %779 = vset.pattern.permute.xlu0 14
        %780 = vperm.xlu0 %779, %v441
        %v781 = vpop.permute.xlu0 %780
        %v783 = vunpack.c.l.s4 839922192
        %v784 = vunpack.c.0.s8 %v783
        %v785 = vperm.slane %v781, %v784
        %v787 = vmul.f32 %v439, %v785
        %v788 = vmul.f32 %v440, %v785
        %791 = vrot.lane.b32.xlu0 %v787, 84
        %v792 = vpop.permute.xlu0 %791
        %793 = vrot.lane.b32.xlu0 %v788, 84
        %v794 = vpop.permute.xlu0 %793
        %v795 = vrot.slane %v792, 4
        %v796 = vrot.slane %v794, 4
        %v797 = vsel %vm471, %v795, %v796
        %vm798 = vcmask 687104
        %v799 = vsel %vm798, %v792, %v797
        %v800 = vsel %vm798, %v794, %v796
        %v803 = vadd.f32 %v777, %v799
        %v804 = vadd.f32 %v778, %v800
        %805 = vset.pattern.permute.xlu0 15
        %806 = vperm.xlu0 %805, %v441
        %v807 = vpop.permute.xlu0 %806
        %v809 = vunpack.c.l.s4 839922192
        %v810 = vunpack.c.0.s8 %v809
        %v811 = vperm.slane %v807, %v810
        %v813 = vmul.f32 %v439, %v811
        %v814 = vmul.f32 %v440, %v811
        %817 = vrot.lane.b32.xlu0 %v813, 83
        %v818 = vpop.permute.xlu0 %817
        %819 = vrot.lane.b32.xlu0 %v814, 83
        %v820 = vpop.permute.xlu0 %819
        %v821 = vrot.slane %v818, 4
        %v822 = vrot.slane %v820, 4
        %v823 = vsel %vm471, %v821, %v822
        %vm824 = vcmask 678912
        %v825 = vsel %vm824, %v818, %v823
        %v826 = vsel %vm824, %v820, %v822
        %v829 = vadd.f32 %v803, %v825
        %v830 = vadd.f32 %v804, %v826
        %831 = vset.pattern.permute.xlu0 16
        %832 = vperm.xlu0 %831, %v441
        %v833 = vpop.permute.xlu0 %832
        %v835 = vunpack.c.l.s4 839922192
        %v836 = vunpack.c.0.s8 %v835
        %v837 = vperm.slane %v833, %v836
        %v839 = vmul.f32 %v439, %v837
        %v840 = vmul.f32 %v440, %v837
        %843 = vrot.lane.b32.xlu0 %v839, 82
        %v844 = vpop.permute.xlu0 %843
        %845 = vrot.lane.b32.xlu0 %v840, 82
        %v846 = vpop.permute.xlu0 %845
        %v847 = vrot.slane %v844, 4
        %v848 = vrot.slane %v846, 4
        %v849 = vsel %vm471, %v847, %v848
        %vm850 = vcmask 670720
        %v851 = vsel %vm850, %v844, %v849
        %v852 = vsel %vm850, %v846, %v848
        %v855 = vadd.f32 %v829, %v851
        %v856 = vadd.f32 %v830, %v852
        %857 = vset.pattern.permute.xlu0 17
        %858 = vperm.xlu0 %857, %v441
        %v859 = vpop.permute.xlu0 %858
        %v861 = vunpack.c.l.s4 839922192
        %v862 = vunpack.c.0.s8 %v861
        %v863 = vperm.slane %v859, %v862
        %v865 = vmul.f32 %v439, %v863
        %v866 = vmul.f32 %v440, %v863
        %869 = vrot.lane.b32.xlu0 %v865, 81
        %v870 = vpop.permute.xlu0 %869
        %871 = vrot.lane.b32.xlu0 %v866, 81
        %v872 = vpop.permute.xlu0 %871
        %v873 = vrot.slane %v870, 4
        %v874 = vrot.slane %v872, 4
        %v875 = vsel %vm471, %v873, %v874
        %vm876 = vcmask 662528
        %v877 = vsel %vm876, %v870, %v875
        %v878 = vsel %vm876, %v872, %v874
        %v881 = vadd.f32 %v855, %v877
        %v882 = vadd.f32 %v856, %v878
        %883 = vset.pattern.permute.xlu0 18
        %884 = vperm.xlu0 %883, %v441
        %v885 = vpop.permute.xlu0 %884
        %v887 = vunpack.c.l.s4 839922192
        %v888 = vunpack.c.0.s8 %v887
        %v889 = vperm.slane %v885, %v888
        %v891 = vmul.f32 %v439, %v889
        %v892 = vmul.f32 %v440, %v889
        %895 = vrot.lane.b32.xlu0 %v891, 80
        %v896 = vpop.permute.xlu0 %895
        %897 = vrot.lane.b32.xlu0 %v892, 80
        %v898 = vpop.permute.xlu0 %897
        %v899 = vrot.slane %v896, 4
        %v900 = vrot.slane %v898, 4
        %v901 = vsel %vm471, %v899, %v900
        %vm902 = vcmask 654336
        %v903 = vsel %vm902, %v896, %v901
        %v904 = vsel %vm902, %v898, %v900
        %v907 = vadd.f32 %v881, %v903
        %v908 = vadd.f32 %v882, %v904
        %909 = vset.pattern.permute.xlu0 19
        %910 = vperm.xlu0 %909, %v441
        %v911 = vpop.permute.xlu0 %910
        %v913 = vunpack.c.l.s4 839922192
        %v914 = vunpack.c.0.s8 %v913
        %v915 = vperm.slane %v911, %v914
        %v917 = vmul.f32 %v439, %v915
        %v918 = vmul.f32 %v440, %v915
        %921 = vrot.lane.b32.xlu0 %v917, 79
        %v922 = vpop.permute.xlu0 %921
        %923 = vrot.lane.b32.xlu0 %v918, 79
        %v924 = vpop.permute.xlu0 %923
        %v925 = vrot.slane %v922, 4
        %v926 = vrot.slane %v924, 4
        %v927 = vsel %vm471, %v925, %v926
        %vm928 = vcmask 646144
        %v929 = vsel %vm928, %v922, %v927
        %v930 = vsel %vm928, %v924, %v926
        %v933 = vadd.f32 %v907, %v929
        %v934 = vadd.f32 %v908, %v930
        %935 = vset.pattern.permute.xlu0 20
        %936 = vperm.xlu0 %935, %v441
        %v937 = vpop.permute.xlu0 %936
        %v939 = vunpack.c.l.s4 839922192
        %v940 = vunpack.c.0.s8 %v939
        %v941 = vperm.slane %v937, %v940
        %v943 = vmul.f32 %v439, %v941
        %v944 = vmul.f32 %v440, %v941
        %947 = vrot.lane.b32.xlu0 %v943, 78
        %v948 = vpop.permute.xlu0 %947
        %949 = vrot.lane.b32.xlu0 %v944, 78
        %v950 = vpop.permute.xlu0 %949
        %v951 = vrot.slane %v948, 4
        %v952 = vrot.slane %v950, 4
        %v953 = vsel %vm471, %v951, %v952
        %vm954 = vcmask 637952
        %v955 = vsel %vm954, %v948, %v953
        %v956 = vsel %vm954, %v950, %v952
        %v959 = vadd.f32 %v933, %v955
        %v960 = vadd.f32 %v934, %v956
        %961 = vset.pattern.permute.xlu0 21
        %962 = vperm.xlu0 %961, %v441
        %v963 = vpop.permute.xlu0 %962
        %v965 = vunpack.c.l.s4 839922192
        %v966 = vunpack.c.0.s8 %v965
        %v967 = vperm.slane %v963, %v966
        %v969 = vmul.f32 %v439, %v967
        %v970 = vmul.f32 %v440, %v967
        %973 = vrot.lane.b32.xlu0 %v969, 62
        %v974 = vpop.permute.xlu0 %973
        %975 = vrot.lane.b32.xlu0 %v970, 62
        %v976 = vpop.permute.xlu0 %975
        %v977 = vrot.slane %v974, 4
        %v978 = vrot.slane %v976, 4
        %v979 = vsel %vm471, %v977, %v978
        %vm980 = vcmask 506880
        %v981 = vsel %vm980, %v974, %v979
        %v982 = vsel %vm980, %v976, %v978
        %v985 = vadd.f32 %v959, %v981
        %v986 = vadd.f32 %v960, %v982
        %987 = vset.pattern.permute.xlu0 22
        %988 = vperm.xlu0 %987, %v441
        %v989 = vpop.permute.xlu0 %988
        %v991 = vunpack.c.l.s4 839922192
        %v992 = vunpack.c.0.s8 %v991
        %v993 = vperm.slane %v989, %v992
        %v995 = vmul.f32 %v439, %v993
        %v996 = vmul.f32 %v440, %v993
        %999 = vrot.lane.b32.xlu0 %v995, 61
        %v1000 = vpop.permute.xlu0 %999
        %1001 = vrot.lane.b32.xlu0 %v996, 61
        %v1002 = vpop.permute.xlu0 %1001
        %v1003 = vrot.slane %v1000, 4
        %v1004 = vrot.slane %v1002, 4
        %v1005 = vsel %vm471, %v1003, %v1004
        %vm1006 = vcmask 498688
        %v1007 = vsel %vm1006, %v1000, %v1005
        %v1008 = vsel %vm1006, %v1002, %v1004
        %v1011 = vadd.f32 %v985, %v1007
        %v1012 = vadd.f32 %v986, %v1008
        %1013 = vset.pattern.permute.xlu0 23
        %1014 = vperm.xlu0 %1013, %v441
        %v1015 = vpop.permute.xlu0 %1014
        %v1017 = vunpack.c.l.s4 839922192
        %v1018 = vunpack.c.0.s8 %v1017
        %v1019 = vperm.slane %v1015, %v1018
        %v1021 = vmul.f32 %v439, %v1019
        %v1022 = vmul.f32 %v440, %v1019
        %1025 = vrot.lane.b32.xlu0 %v1021, 60
        %v1026 = vpop.permute.xlu0 %1025
        %1027 = vrot.lane.b32.xlu0 %v1022, 60
        %v1028 = vpop.permute.xlu0 %1027
        %v1029 = vrot.slane %v1026, 4
        %v1030 = vrot.slane %v1028, 4
        %v1031 = vsel %vm471, %v1029, %v1030
        %vm1032 = vcmask 490496
        %v1033 = vsel %vm1032, %v1026, %v1031
        %v1034 = vsel %vm1032, %v1028, %v1030
        %v1037 = vadd.f32 %v1011, %v1033
        %v1038 = vadd.f32 %v1012, %v1034
        %1039 = vset.pattern.permute.xlu0 24
        %1040 = vperm.xlu0 %1039, %v441
        %v1041 = vpop.permute.xlu0 %1040
        %v1043 = vunpack.c.l.s4 839922192
        %v1044 = vunpack.c.0.s8 %v1043
        %v1045 = vperm.slane %v1041, %v1044
        %v1047 = vmul.f32 %v439, %v1045
        %v1048 = vmul.f32 %v440, %v1045
        %1051 = vrot.lane.b32.xlu0 %v1047, 59
        %v1052 = vpop.permute.xlu0 %1051
        %1053 = vrot.lane.b32.xlu0 %v1048, 59
        %v1054 = vpop.permute.xlu0 %1053
        %v1055 = vrot.slane %v1052, 4
        %v1056 = vrot.slane %v1054, 4
        %v1057 = vsel %vm471, %v1055, %v1056
        %vm1058 = vcmask 482304
        %v1059 = vsel %vm1058, %v1052, %v1057
        %v1060 = vsel %vm1058, %v1054, %v1056
        %v1063 = vadd.f32 %v1037, %v1059
        %v1064 = vadd.f32 %v1038, %v1060
        %1065 = vset.pattern.permute.xlu0 25
        %1066 = vperm.xlu0 %1065, %v441
        %v1067 = vpop.permute.xlu0 %1066
        %v1069 = vunpack.c.l.s4 839922192
        %v1070 = vunpack.c.0.s8 %v1069
        %v1071 = vperm.slane %v1067, %v1070
        %v1073 = vmul.f32 %v439, %v1071
        %v1074 = vmul.f32 %v440, %v1071
        %1077 = vrot.lane.b32.xlu0 %v1073, 58
        %v1078 = vpop.permute.xlu0 %1077
        %1079 = vrot.lane.b32.xlu0 %v1074, 58
        %v1080 = vpop.permute.xlu0 %1079
        %v1081 = vrot.slane %v1078, 4
        %v1082 = vrot.slane %v1080, 4
        %v1083 = vsel %vm471, %v1081, %v1082
        %vm1084 = vcmask 474112
        %v1085 = vsel %vm1084, %v1078, %v1083
        %v1086 = vsel %vm1084, %v1080, %v1082
        %v1089 = vadd.f32 %v1063, %v1085
        %v1090 = vadd.f32 %v1064, %v1086
        %1091 = vset.pattern.permute.xlu0 26
        %1092 = vperm.xlu0 %1091, %v441
        %v1093 = vpop.permute.xlu0 %1092
        %v1095 = vunpack.c.l.s4 839922192
        %v1096 = vunpack.c.0.s8 %v1095
        %v1097 = vperm.slane %v1093, %v1096
        %v1099 = vmul.f32 %v439, %v1097
        %v1100 = vmul.f32 %v440, %v1097
        %1103 = vrot.lane.b32.xlu0 %v1099, 57
        %v1104 = vpop.permute.xlu0 %1103
        %1105 = vrot.lane.b32.xlu0 %v1100, 57
        %v1106 = vpop.permute.xlu0 %1105
        %v1107 = vrot.slane %v1104, 4
        %v1108 = vrot.slane %v1106, 4
        %v1109 = vsel %vm471, %v1107, %v1108
        %vm1110 = vcmask 465920
        %v1111 = vsel %vm1110, %v1104, %v1109
        %v1112 = vsel %vm1110, %v1106, %v1108
        %v1115 = vadd.f32 %v1089, %v1111
        %v1116 = vadd.f32 %v1090, %v1112
        %1117 = vset.pattern.permute.xlu0 27
        %1118 = vperm.xlu0 %1117, %v441
        %v1119 = vpop.permute.xlu0 %1118
        %v1121 = vunpack.c.l.s4 839922192
        %v1122 = vunpack.c.0.s8 %v1121
        %v1123 = vperm.slane %v1119, %v1122
        %v1125 = vmul.f32 %v439, %v1123
        %v1126 = vmul.f32 %v440, %v1123
        %1129 = vrot.lane.b32.xlu0 %v1125, 56
        %v1130 = vpop.permute.xlu0 %1129
        %1131 = vrot.lane.b32.xlu0 %v1126, 56
        %v1132 = vpop.permute.xlu0 %1131
        %v1133 = vrot.slane %v1130, 4
        %v1134 = vrot.slane %v1132, 4
        %v1135 = vsel %vm471, %v1133, %v1134
        %vm1136 = vcmask 457728
        %v1137 = vsel %vm1136, %v1130, %v1135
        %v1138 = vsel %vm1136, %v1132, %v1134
        %v1141 = vadd.f32 %v1115, %v1137
        %v1142 = vadd.f32 %v1116, %v1138
        %1143 = vset.pattern.permute.xlu0 28
        %1144 = vperm.xlu0 %1143, %v441
        %v1145 = vpop.permute.xlu0 %1144
        %v1147 = vunpack.c.l.s4 839922192
        %v1148 = vunpack.c.0.s8 %v1147
        %v1149 = vperm.slane %v1145, %v1148
        %v1151 = vmul.f32 %v439, %v1149
        %v1152 = vmul.f32 %v440, %v1149
        %1155 = vrot.lane.b32.xlu0 %v1151, 40
        %v1156 = vpop.permute.xlu0 %1155
        %1157 = vrot.lane.b32.xlu0 %v1152, 40
        %v1158 = vpop.permute.xlu0 %1157
        %v1159 = vrot.slane %v1156, 4
        %v1160 = vrot.slane %v1158, 4
        %v1161 = vsel %vm471, %v1159, %v1160
        %vm1162 = vcmask 326656
        %v1163 = vsel %vm1162, %v1156, %v1161
        %v1164 = vsel %vm1162, %v1158, %v1160
        %v1167 = vadd.f32 %v1141, %v1163
        %v1168 = vadd.f32 %v1142, %v1164
        %1169 = vset.pattern.permute.xlu0 29
        %1170 = vperm.xlu0 %1169, %v441
        %v1171 = vpop.permute.xlu0 %1170
        %v1173 = vunpack.c.l.s4 839922192
        %v1174 = vunpack.c.0.s8 %v1173
        %v1175 = vperm.slane %v1171, %v1174
        %v1177 = vmul.f32 %v439, %v1175
        %v1178 = vmul.f32 %v440, %v1175
        %1181 = vrot.lane.b32.xlu0 %v1177, 39
        %v1182 = vpop.permute.xlu0 %1181
        %1183 = vrot.lane.b32.xlu0 %v1178, 39
        %v1184 = vpop.permute.xlu0 %1183
        %v1185 = vrot.slane %v1182, 4
        %v1186 = vrot.slane %v1184, 4
        %v1187 = vsel %vm471, %v1185, %v1186
        %vm1188 = vcmask 318464
        %v1189 = vsel %vm1188, %v1182, %v1187
        %v1190 = vsel %vm1188, %v1184, %v1186
        %v1193 = vadd.f32 %v1167, %v1189
        %v1194 = vadd.f32 %v1168, %v1190
        %1195 = vset.pattern.permute.xlu0 30
        %1196 = vperm.xlu0 %1195, %v441
        %v1197 = vpop.permute.xlu0 %1196
        %v1199 = vunpack.c.l.s4 839922192
        %v1200 = vunpack.c.0.s8 %v1199
        %v1201 = vperm.slane %v1197, %v1200
        %v1203 = vmul.f32 %v439, %v1201
        %v1204 = vmul.f32 %v440, %v1201
        %1207 = vrot.lane.b32.xlu0 %v1203, 38
        %v1208 = vpop.permute.xlu0 %1207
        %1209 = vrot.lane.b32.xlu0 %v1204, 38
        %v1210 = vpop.permute.xlu0 %1209
        %v1211 = vrot.slane %v1208, 4
        %v1212 = vrot.slane %v1210, 4
        %v1213 = vsel %vm471, %v1211, %v1212
        %vm1214 = vcmask 310272
        %v1215 = vsel %vm1214, %v1208, %v1213
        %v1216 = vsel %vm1214, %v1210, %v1212
        %v1219 = vadd.f32 %v1193, %v1215
        %v1220 = vadd.f32 %v1194, %v1216
        %1221 = vset.pattern.permute.xlu0 31
        %1222 = vperm.xlu0 %1221, %v441
        %v1223 = vpop.permute.xlu0 %1222
        %v1225 = vunpack.c.l.s4 839922192
        %v1226 = vunpack.c.0.s8 %v1225
        %v1227 = vperm.slane %v1223, %v1226
        %v1229 = vmul.f32 %v439, %v1227
        %v1230 = vmul.f32 %v440, %v1227
        %1233 = vrot.lane.b32.xlu0 %v1229, 37
        %v1234 = vpop.permute.xlu0 %1233
        %1235 = vrot.lane.b32.xlu0 %v1230, 37
        %v1236 = vpop.permute.xlu0 %1235
        %v1237 = vrot.slane %v1234, 4
        %v1238 = vrot.slane %v1236, 4
        %v1239 = vsel %vm471, %v1237, %v1238
        %vm1240 = vcmask 302080
        %v1241 = vsel %vm1240, %v1234, %v1239
        %v1242 = vsel %vm1240, %v1236, %v1238
        %v1245 = vadd.f32 %v1219, %v1241
        %v1246 = vadd.f32 %v1220, %v1242
        %1247 = vset.pattern.permute.xlu0 32
        %1248 = vperm.xlu0 %1247, %v441
        %v1249 = vpop.permute.xlu0 %1248
        %v1251 = vunpack.c.l.s4 839922192
        %v1252 = vunpack.c.0.s8 %v1251
        %v1253 = vperm.slane %v1249, %v1252
        %v1255 = vmul.f32 %v439, %v1253
        %v1256 = vmul.f32 %v440, %v1253
        %1259 = vrot.lane.b32.xlu0 %v1255, 36
        %v1260 = vpop.permute.xlu0 %1259
        %1261 = vrot.lane.b32.xlu0 %v1256, 36
        %v1262 = vpop.permute.xlu0 %1261
        %v1263 = vrot.slane %v1260, 4
        %v1264 = vrot.slane %v1262, 4
        %v1265 = vsel %vm471, %v1263, %v1264
        %vm1266 = vcmask 293888
        %v1267 = vsel %vm1266, %v1260, %v1265
        %v1268 = vsel %vm1266, %v1262, %v1264
        %v1271 = vadd.f32 %v1245, %v1267
        %v1272 = vadd.f32 %v1246, %v1268
        %1273 = vset.pattern.permute.xlu0 33
        %1274 = vperm.xlu0 %1273, %v441
        %v1275 = vpop.permute.xlu0 %1274
        %v1277 = vunpack.c.l.s4 839922192
        %v1278 = vunpack.c.0.s8 %v1277
        %v1279 = vperm.slane %v1275, %v1278
        %v1281 = vmul.f32 %v439, %v1279
        %v1282 = vmul.f32 %v440, %v1279
        %1285 = vrot.lane.b32.xlu0 %v1281, 35
        %v1286 = vpop.permute.xlu0 %1285
        %1287 = vrot.lane.b32.xlu0 %v1282, 35
        %v1288 = vpop.permute.xlu0 %1287
        %v1289 = vrot.slane %v1286, 4
        %v1290 = vrot.slane %v1288, 4
        %v1291 = vsel %vm471, %v1289, %v1290
        %vm1292 = vcmask 285696
        %v1293 = vsel %vm1292, %v1286, %v1291
        %v1294 = vsel %vm1292, %v1288, %v1290
        %v1297 = vadd.f32 %v1271, %v1293
        %v1298 = vadd.f32 %v1272, %v1294
        %1299 = vset.pattern.permute.xlu0 34
        %1300 = vperm.xlu0 %1299, %v441
        %v1301 = vpop.permute.xlu0 %1300
        %v1303 = vunpack.c.l.s4 839922192
        %v1304 = vunpack.c.0.s8 %v1303
        %v1305 = vperm.slane %v1301, %v1304
        %v1307 = vmul.f32 %v439, %v1305
        %v1308 = vmul.f32 %v440, %v1305
        %1311 = vrot.lane.b32.xlu0 %v1307, 34
        %v1312 = vpop.permute.xlu0 %1311
        %1313 = vrot.lane.b32.xlu0 %v1308, 34
        %v1314 = vpop.permute.xlu0 %1313
        %v1315 = vrot.slane %v1312, 4
        %v1316 = vrot.slane %v1314, 4
        %v1317 = vsel %vm471, %v1315, %v1316
        %vm1318 = vcmask 277504
        %v1319 = vsel %vm1318, %v1312, %v1317
        %v1320 = vsel %vm1318, %v1314, %v1316
        %v1323 = vadd.f32 %v1297, %v1319
        %v1324 = vadd.f32 %v1298, %v1320
        %1325 = vset.pattern.permute.xlu0 35
        %1326 = vperm.xlu0 %1325, %v441
        %v1327 = vpop.permute.xlu0 %1326
        %v1329 = vunpack.c.l.s4 839922192
        %v1330 = vunpack.c.0.s8 %v1329
        %v1331 = vperm.slane %v1327, %v1330
        %v1333 = vmul.f32 %v439, %v1331
        %v1334 = vmul.f32 %v440, %v1331
        %1337 = vrot.lane.b32.xlu0 %v1333, 18
        %v1338 = vpop.permute.xlu0 %1337
        %1339 = vrot.lane.b32.xlu0 %v1334, 18
        %v1340 = vpop.permute.xlu0 %1339
        %v1341 = vrot.slane %v1338, 4
        %v1342 = vrot.slane %v1340, 4
        %v1343 = vsel %vm471, %v1341, %v1342
        %vm1344 = vcmask 146432
        %v1345 = vsel %vm1344, %v1338, %v1343
        %v1346 = vsel %vm1344, %v1340, %v1342
        %v1349 = vadd.f32 %v1323, %v1345
        %v1350 = vadd.f32 %v1324, %v1346
        %1351 = vset.pattern.permute.xlu0 36
        %1352 = vperm.xlu0 %1351, %v441
        %v1353 = vpop.permute.xlu0 %1352
        %v1355 = vunpack.c.l.s4 839922192
        %v1356 = vunpack.c.0.s8 %v1355
        %v1357 = vperm.slane %v1353, %v1356
        %v1359 = vmul.f32 %v439, %v1357
        %v1360 = vmul.f32 %v440, %v1357
        %1363 = vrot.lane.b32.xlu0 %v1359, 17
        %v1364 = vpop.permute.xlu0 %1363
        %1365 = vrot.lane.b32.xlu0 %v1360, 17
        %v1366 = vpop.permute.xlu0 %1365
        %v1367 = vrot.slane %v1364, 4
        %v1368 = vrot.slane %v1366, 4
        %v1369 = vsel %vm471, %v1367, %v1368
        %vm1370 = vcmask 138240
        %v1371 = vsel %vm1370, %v1364, %v1369
        %v1372 = vsel %vm1370, %v1366, %v1368
        %v1375 = vadd.f32 %v1349, %v1371
        %v1376 = vadd.f32 %v1350, %v1372
        %1377 = vset.pattern.permute.xlu0 37
        %1378 = vperm.xlu0 %1377, %v441
        %v1379 = vpop.permute.xlu0 %1378
        %v1381 = vunpack.c.l.s4 839922192
        %v1382 = vunpack.c.0.s8 %v1381
        %v1383 = vperm.slane %v1379, %v1382
        %v1385 = vmul.f32 %v439, %v1383
        %v1386 = vmul.f32 %v440, %v1383
        %1389 = vrot.lane.b32.xlu0 %v1385, 16
        %v1390 = vpop.permute.xlu0 %1389
        %1391 = vrot.lane.b32.xlu0 %v1386, 16
        %v1392 = vpop.permute.xlu0 %1391
        %v1393 = vrot.slane %v1390, 4
        %v1394 = vrot.slane %v1392, 4
        %v1395 = vsel %vm471, %v1393, %v1394
        %vm1396 = vcmask 130048
        %v1397 = vsel %vm1396, %v1390, %v1395
        %v1398 = vsel %vm1396, %v1392, %v1394
        %v1401 = vadd.f32 %v1375, %v1397
        %v1402 = vadd.f32 %v1376, %v1398
        %1403 = vset.pattern.permute.xlu0 38
        %1404 = vperm.xlu0 %1403, %v441
        %v1405 = vpop.permute.xlu0 %1404
        %v1407 = vunpack.c.l.s4 839922192
        %v1408 = vunpack.c.0.s8 %v1407
        %v1409 = vperm.slane %v1405, %v1408
        %v1411 = vmul.f32 %v439, %v1409
        %v1412 = vmul.f32 %v440, %v1409
        %1415 = vrot.lane.b32.xlu0 %v1411, 15
        %v1416 = vpop.permute.xlu0 %1415
        %1417 = vrot.lane.b32.xlu0 %v1412, 15
        %v1418 = vpop.permute.xlu0 %1417
        %v1419 = vrot.slane %v1416, 4
        %v1420 = vrot.slane %v1418, 4
        %v1421 = vsel %vm471, %v1419, %v1420
        %vm1422 = vcmask 121856
        %v1423 = vsel %vm1422, %v1416, %v1421
        %v1424 = vsel %vm1422, %v1418, %v1420
        %v1427 = vadd.f32 %v1401, %v1423
        %v1428 = vadd.f32 %v1402, %v1424
        %1429 = vset.pattern.permute.xlu0 39
        %1430 = vperm.xlu0 %1429, %v441
        %v1431 = vpop.permute.xlu0 %1430
        %v1433 = vunpack.c.l.s4 839922192
        %v1434 = vunpack.c.0.s8 %v1433
        %v1435 = vperm.slane %v1431, %v1434
        %v1437 = vmul.f32 %v439, %v1435
        %v1438 = vmul.f32 %v440, %v1435
        %1441 = vrot.lane.b32.xlu0 %v1437, 14
        %v1442 = vpop.permute.xlu0 %1441
        %1443 = vrot.lane.b32.xlu0 %v1438, 14
        %v1444 = vpop.permute.xlu0 %1443
        %v1445 = vrot.slane %v1442, 4
        %v1446 = vrot.slane %v1444, 4
        %v1447 = vsel %vm471, %v1445, %v1446
        %vm1448 = vcmask 113664
        %v1449 = vsel %vm1448, %v1442, %v1447
        %v1450 = vsel %vm1448, %v1444, %v1446
        %v1453 = vadd.f32 %v1427, %v1449
        %v1454 = vadd.f32 %v1428, %v1450
        %1455 = vset.pattern.permute.xlu0 40
        %1456 = vperm.xlu0 %1455, %v441
        %v1457 = vpop.permute.xlu0 %1456
        %v1459 = vunpack.c.l.s4 839922192
        %v1460 = vunpack.c.0.s8 %v1459
        %v1461 = vperm.slane %v1457, %v1460
        %v1463 = vmul.f32 %v439, %v1461
        %v1464 = vmul.f32 %v440, %v1461
        %1467 = vrot.lane.b32.xlu0 %v1463, 13
        %v1468 = vpop.permute.xlu0 %1467
        %1469 = vrot.lane.b32.xlu0 %v1464, 13
        %v1470 = vpop.permute.xlu0 %1469
        %v1471 = vrot.slane %v1468, 4
        %v1472 = vrot.slane %v1470, 4
        %v1473 = vsel %vm471, %v1471, %v1472
        %vm1474 = vcmask 105472
        %v1475 = vsel %vm1474, %v1468, %v1473
        %v1476 = vsel %vm1474, %v1470, %v1472
        %v1479 = vadd.f32 %v1453, %v1475
        %v1480 = vadd.f32 %v1454, %v1476
        %1481 = vset.pattern.permute.xlu0 41
        %1482 = vperm.xlu0 %1481, %v441
        %v1483 = vpop.permute.xlu0 %1482
        %v1485 = vunpack.c.l.s4 839922192
        %v1486 = vunpack.c.0.s8 %v1485
        %v1487 = vperm.slane %v1483, %v1486
        %v1489 = vmul.f32 %v439, %v1487
        %v1490 = vmul.f32 %v440, %v1487
        %1493 = vrot.lane.b32.xlu0 %v1489, 12
        %v1494 = vpop.permute.xlu0 %1493
        %1495 = vrot.lane.b32.xlu0 %v1490, 12
        %v1496 = vpop.permute.xlu0 %1495
        %v1497 = vrot.slane %v1494, 4
        %v1498 = vrot.slane %v1496, 4
        %v1499 = vsel %vm471, %v1497, %v1498
        %vm1500 = vcmask 97280
        %v1501 = vsel %vm1500, %v1494, %v1499
        %v1502 = vsel %vm1500, %v1496, %v1498
        %v1505 = vadd.f32 %v1479, %v1501
        %v1506 = vadd.f32 %v1480, %v1502
        %1507 = vset.pattern.permute.xlu0 42
        %1508 = vperm.xlu0 %1507, %v441
        %v1509 = vpop.permute.xlu0 %1508
        %1512 = vrot.lane.b32.xlu0 %v439, 124
        %v1513 = vpop.permute.xlu0 %1512
        %1514 = vrot.lane.b32.xlu0 %v440, 124
        %v1515 = vpop.permute.xlu0 %1514
        %v1516 = vrot.slane %v1513, 4
        %v1517 = vrot.slane %v1515, 4
        %v1518 = vsel %vm471, %v1516, %v1517
        %v1519 = vsel %vm548, %v1518, %v1515
        %v1523 = vunpack.c.l.s4 839922192
        %v1524 = vunpack.c.0.s8 %v1523
        %v1525 = vperm.slane %v1509, %v1524
        %v1527 = vmul.f32 %v1519, %v1525
        %v1528 = vmul.f32 %v1517, %v1525
        %v1529 = vadd.f32 %v1505, %v1527
        %v1530 = vadd.f32 %v1506, %v1528
        %1531 = vset.pattern.permute.xlu0 43
        %1532 = vperm.xlu0 %1531, %v441
        %v1533 = vpop.permute.xlu0 %1532
        %1534 = vrot.lane.b32.xlu0 %v439, 123
        %v1535 = vpop.permute.xlu0 %1534
        %1536 = vrot.lane.b32.xlu0 %v440, 123
        %v1537 = vpop.permute.xlu0 %1536
        %v1538 = vrot.slane %v1535, 4
        %v1539 = vrot.slane %v1537, 4
        %v1540 = vsel %vm471, %v1538, %v1539
        %v1541 = vsel %vm573, %v1540, %v1537
        %v1545 = vunpack.c.l.s4 839922192
        %v1546 = vunpack.c.0.s8 %v1545
        %v1547 = vperm.slane %v1533, %v1546
        %v1549 = vmul.f32 %v1541, %v1547
        %v1550 = vmul.f32 %v1539, %v1547
        %v1551 = vadd.f32 %v1529, %v1549
        %v1552 = vadd.f32 %v1530, %v1550
        %1553 = vset.pattern.permute.xlu0 44
        %1554 = vperm.xlu0 %1553, %v441
        %v1555 = vpop.permute.xlu0 %1554
        %1556 = vrot.lane.b32.xlu0 %v439, 122
        %v1557 = vpop.permute.xlu0 %1556
        %1558 = vrot.lane.b32.xlu0 %v440, 122
        %v1559 = vpop.permute.xlu0 %1558
        %v1560 = vrot.slane %v1557, 4
        %v1561 = vrot.slane %v1559, 4
        %v1562 = vsel %vm471, %v1560, %v1561
        %v1563 = vsel %vm598, %v1562, %v1559
        %v1567 = vunpack.c.l.s4 839922192
        %v1568 = vunpack.c.0.s8 %v1567
        %v1569 = vperm.slane %v1555, %v1568
        %v1571 = vmul.f32 %v1563, %v1569
        %v1572 = vmul.f32 %v1561, %v1569
        %v1573 = vadd.f32 %v1551, %v1571
        %v1574 = vadd.f32 %v1552, %v1572
        %1575 = vset.pattern.permute.xlu0 45
        %1576 = vperm.xlu0 %1575, %v441
        %v1577 = vpop.permute.xlu0 %1576
        %1578 = vrot.lane.b32.xlu0 %v439, 121
        %v1579 = vpop.permute.xlu0 %1578
        %1580 = vrot.lane.b32.xlu0 %v440, 121
        %v1581 = vpop.permute.xlu0 %1580
        %v1582 = vrot.slane %v1579, 4
        %v1583 = vrot.slane %v1581, 4
        %v1584 = vsel %vm471, %v1582, %v1583
        %vm1585 = vcmask 990208
        %v1586 = vsel %vm1585, %v1584, %v1581
        %v1590 = vunpack.c.l.s4 839922192
        %v1591 = vunpack.c.0.s8 %v1590
        %v1592 = vperm.slane %v1577, %v1591
        %v1594 = vmul.f32 %v1586, %v1592
        %v1595 = vmul.f32 %v1583, %v1592
        %v1596 = vadd.f32 %v1573, %v1594
        %v1597 = vadd.f32 %v1574, %v1595
        %1598 = vset.pattern.permute.xlu0 46
        %1599 = vperm.xlu0 %1598, %v441
        %v1600 = vpop.permute.xlu0 %1599
        %1601 = vrot.lane.b32.xlu0 %v439, 120
        %v1602 = vpop.permute.xlu0 %1601
        %1603 = vrot.lane.b32.xlu0 %v440, 120
        %v1604 = vpop.permute.xlu0 %1603
        %v1605 = vrot.slane %v1602, 4
        %v1606 = vrot.slane %v1604, 4
        %v1607 = vsel %vm471, %v1605, %v1606
        %vm1608 = vcmask 982016
        %v1609 = vsel %vm1608, %v1607, %v1604
        %v1613 = vunpack.c.l.s4 839922192
        %v1614 = vunpack.c.0.s8 %v1613
        %v1615 = vperm.slane %v1600, %v1614
        %v1617 = vmul.f32 %v1609, %v1615
        %v1618 = vmul.f32 %v1606, %v1615
        %v1619 = vadd.f32 %v1596, %v1617
        %v1620 = vadd.f32 %v1597, %v1618
        %1621 = vset.pattern.permute.xlu0 47
        %1622 = vperm.xlu0 %1621, %v441
        %v1623 = vpop.permute.xlu0 %1622
        %1624 = vrot.lane.b32.xlu0 %v439, 119
        %v1625 = vpop.permute.xlu0 %1624
        %1626 = vrot.lane.b32.xlu0 %v440, 119
        %v1627 = vpop.permute.xlu0 %1626
        %v1628 = vrot.slane %v1625, 4
        %v1629 = vrot.slane %v1627, 4
        %v1630 = vsel %vm471, %v1628, %v1629
        %vm1631 = vcmask 973824
        %v1632 = vsel %vm1631, %v1630, %v1627
        %v1636 = vunpack.c.l.s4 839922192
        %v1637 = vunpack.c.0.s8 %v1636
        %v1638 = vperm.slane %v1623, %v1637
        %v1640 = vmul.f32 %v1632, %v1638
        %v1641 = vmul.f32 %v1629, %v1638
        %v1642 = vadd.f32 %v1619, %v1640
        %v1643 = vadd.f32 %v1620, %v1641
        %1644 = vset.pattern.permute.xlu0 48
        %1645 = vperm.xlu0 %1644, %v441
        %v1646 = vpop.permute.xlu0 %1645
        %1647 = vrot.lane.b32.xlu0 %v439, 118
        %v1648 = vpop.permute.xlu0 %1647
        %1649 = vrot.lane.b32.xlu0 %v440, 118
        %v1650 = vpop.permute.xlu0 %1649
        %v1651 = vrot.slane %v1648, 4
        %v1652 = vrot.slane %v1650, 4
        %v1653 = vsel %vm471, %v1651, %v1652
        %vm1654 = vcmask 965632
        %v1655 = vsel %vm1654, %v1653, %v1650
        %v1659 = vunpack.c.l.s4 839922192
        %v1660 = vunpack.c.0.s8 %v1659
        %v1661 = vperm.slane %v1646, %v1660
        %v1663 = vmul.f32 %v1655, %v1661
        %v1664 = vmul.f32 %v1652, %v1661
        %v1665 = vadd.f32 %v1642, %v1663
        %v1666 = vadd.f32 %v1643, %v1664
        %v1667 = vld [vmem:[%s2] sm:$0xf]
        %1669 = vset.pattern.permute.xlu0 0
        %1670 = vperm.xlu0 %1669, %v1667
        %v1671 = vpop.permute.xlu0 %1670
        %v1673 = vunpack.c.l.s4 839922192
        %v1674 = vunpack.c.0.s8 %v1673
        %v1675 = vperm.slane %v1671, %v1674
        %v1677 = vadd.f32 %v1665, %v1675
        %v1678 = vadd.f32 %v1666, %v1675
        %v1681 = vrot.slane %v1677, 5
        %v1682 = vrot.slane %v1681, 4
        %v1683 = vrot.slane %v1678, 5
        %v1684 = vrot.slane %v1683, 4
        %v1687 = vadd.f32 %v1677, %v1682
        %v1688 = vadd.f32 %v1678, %v1684
        %v1689 = vrot.slane %v1677, 6
        %v1690 = vrot.slane %v1689, 4
        %v1691 = vrot.slane %v1678, 6
        %v1692 = vrot.slane %v1691, 4
        %v1695 = vadd.f32 %v1687, %v1690
        %v1696 = vadd.f32 %v1688, %v1692
        %v1697 = vrot.slane %v1677, 7
        %v1698 = vrot.slane %v1697, 4
        %v1699 = vrot.slane %v1678, 7
        %v1700 = vrot.slane %v1699, 4
        %v1703 = vadd.f32 %v1695, %v1698
        %v1704 = vadd.f32 %v1696, %v1700
        %v1705 = vmul.f32 %v1703, 0.25
        %v1706 = vmul.f32 %v1704, 0.25
        %v1709 = vperm.slane %v1705, 0
        %v1710 = vperm.slane %v1705, 4
        %v1711 = vperm.slane %v1706, 0
        %v1715 = vperm.slane %v1709, 0
        %v1716 = vperm.slane %v1710, 0
        %v1717 = vperm.slane %v1711, 0
        %v1720 = vrot.slane %v1716, 4
        %v1721 = vsel %vm471, %v1715, %v1720
        %v1723 = vsub.f32 %v1677, %v1721
        %v1724 = vsub.f32 %v1678, %v1717
        %v1725 = vmul.f32 %v1723, %v1723
        %v1726 = vmul.f32 %v1724, %v1724
        %v1729 = vrot.slane %v1725, 5
        %v1730 = vrot.slane %v1729, 4
        %v1731 = vrot.slane %v1726, 5
        %v1732 = vrot.slane %v1731, 4
        %v1735 = vadd.f32 %v1725, %v1730
        %v1736 = vadd.f32 %v1726, %v1732
        %v1737 = vrot.slane %v1725, 6
        %v1738 = vrot.slane %v1737, 4
        %v1739 = vrot.slane %v1726, 6
        %v1740 = vrot.slane %v1739, 4
        %v1743 = vadd.f32 %v1735, %v1738
        %v1744 = vadd.f32 %v1736, %v1740
        %v1745 = vrot.slane %v1725, 7
        %v1746 = vrot.slane %v1745, 4
        %v1747 = vrot.slane %v1726, 7
        %v1748 = vrot.slane %v1747, 4
        %v1751 = vadd.f32 %v1743, %v1746
        %v1752 = vadd.f32 %v1744, %v1748
        %v1753 = vmul.f32 %v1751, 0.25
        %v1754 = vmul.f32 %v1752, 0.25
        %v1755 = vadd.f32 %v1753, 1e-06
        %v1756 = vadd.f32 %v1754, 1e-06
        %v1757 = vrsqrt.pop %v1755
        %v1758 = vmul.f32 %v1757, %v1755
        %v1759 = vmul.f32 %v1758, %v1757
        %v1760 = vmul.f32 0.5, %v1759
        %v1761 = vsub.f32 1.5, %v1760
        %v1762 = vmul.f32 %v1757, %v1761
        %vm1763 = vweird.f32 %v1755
        %vm1764 = vweird.f32 %v1757
        %vm1765 = vmor %vm1763, %vm1764
        %v1766 = vsel %vm1765, %v1757, %v1762
        %v1767 = vrsqrt.pop %v1756
        %v1768 = vmul.f32 %v1767, %v1756
        %v1769 = vmul.f32 %v1768, %v1767
        %v1770 = vmul.f32 0.5, %v1769
        %v1771 = vsub.f32 1.5, %v1770
        %v1772 = vmul.f32 %v1767, %v1771
        %vm1773 = vweird.f32 %v1756
        %vm1774 = vweird.f32 %v1767
        %vm1775 = vmor %vm1773, %vm1774
        %v1776 = vsel %vm1775, %v1767, %v1772
        %v1779 = vperm.slane %v1766, 0
        %v1780 = vperm.slane %v1766, 4
        %v1781 = vperm.slane %v1776, 0
        %v1785 = vperm.slane %v1779, 0
        %v1786 = vperm.slane %v1780, 0
        %v1787 = vperm.slane %v1781, 0
        %v1790 = vrot.slane %v1786, 4
        %v1791 = vsel %vm471, %v1785, %v1790
        %v1793 = vmul.f32 %v1723, %v1791
        %v1794 = vmul.f32 %v1724, %v1787
        %v1795 = vld [vmem:[%s3] sm:$0xf]
        %1797 = vset.pattern.permute.xlu0 0
        %1798 = vperm.xlu0 %1797, %v1795
        %v1799 = vpop.permute.xlu0 %1798
        %v1801 = vunpack.c.l.s4 839922192
        %v1802 = vunpack.c.0.s8 %v1801
        %v1803 = vperm.slane %v1799, %v1802
        %v1805 = vmul.f32 %v1793, %v1803
        %v1806 = vmul.f32 %v1794, %v1803
        %v1807 = vld [vmem:[%s4] sm:$0xf]
        %1809 = vset.pattern.permute.xlu0 0
        %1810 = vperm.xlu0 %1809, %v1807
        %v1811 = vpop.permute.xlu0 %1810
        %v1813 = vunpack.c.l.s4 839922192
        %v1814 = vunpack.c.0.s8 %v1813
        %v1815 = vperm.slane %v1811, %v1814
        %v1817 = vadd.f32 %v1805, %v1815
        %v1818 = vadd.f32 %v1806, %v1815
        %v1819 = vld [vmem:[%s5] sm:$0xff]
        %v1820 = vld [vmem:[%s5 + $0x8] sm:$0xff]
        %v1821 = vld [vmem:[%s6] sm:$0xff]
        %v1822 = vld [vmem:[%s6 + $0x8] sm:$0xff]
        %1824 = vset.pattern.permute.xlu0 0
        %1825 = vperm.xlu0 %1824, %v1821
        %v1826 = vpop.permute.xlu0 %1825
        %1829 = vset.pattern.permute.xlu0 0
        %1830 = vperm.xlu0 %1829, %v1822
        %v1831 = vpop.permute.xlu0 %1830
        %1835 = vst [vmem:[#allocation1] ss:$2 sm:$0xff] %v1817
        %s1836 = scalar_lea.vmem [#allocation1], 16
        %1837 = vst [vmem:[%s1836] ss:$2 sm:$0xff] %v1818
        %v1838 = vld.sshfl [vmem:[#allocation1] sm:$0xff pattern:$0x75316420]
        %v1839 = vld.sshfl [vmem:[#allocation1 + $0x8] sm:$0xff pattern:$0x75316420]
        %v1840 = vld.sshfl [vmem:[#allocation1 + $0x10] sm:$0xff pattern:$0x75316420]
        %vm1841 = vcmask 31744
        %v1843 = vsel %vm1841, %v1819, 0
        %v1846 = vsel %vm1841, %v1820, 0
        %v1848 = vsel %vm471, %v1838, 0
        %v1850 = vsel %vm471, %v1839, 0
        %v1852 = vsel %vm471, %v1840, 0
        %1854 = vmatpush.msra.mxu0 0.0
        %1855 = vmatpush.msra.mxu0 0.0
        %1856 = vmatpush.msra.mxu0 0.0
        %1857 = vmatpush.msra.mxu0 0.0
        %1858 = vmatpush.msra.mxu0 0.0
        %1859 = vmatpush.msra.mxu0 0.0
        %1860 = vmatpush.msra.mxu0 0.0
        %1861 = vmatpush.msra.mxu0 0.0
        %1862 = vmatpush.msra.mxu0 0.0
        %1863 = vmatpush.msra.mxu0 0.0
        %1864 = vmatpush.msra.mxu0 0.0
        %1865 = vmatpush.msra.mxu0 0.0
        %1866 = vmatpush.msra.mxu0 0.0
        %1867 = vmatpush.msra.mxu0 0.0
        %1868 = vmatpush.msra.mxu0 0.0
        %1869 = vmatpush.msra.mxu0 %v1848
        %1870 = vmatmul.f32.gmra.mxu0 %v1843
        %v1871 = vpop.f32.mrf.mxu0
        %v1872 = vadd.f32 %v1826, %v1871
        %1873 = vmatmul.f32.gmra.mxu0 %v1846
        %v1874 = vpop.f32.mrf.mxu0
        %v1875 = vadd.f32 %v1831, %v1874
        %1876 = vdwg.mxu0
        %1877 = vmatpush.msra.mxu0 0.0
        %1878 = vmatpush.msra.mxu0 0.0
        %1879 = vmatpush.msra.mxu0 0.0
        %1880 = vmatpush.msra.mxu0 0.0
        %1881 = vmatpush.msra.mxu0 0.0
        %1882 = vmatpush.msra.mxu0 0.0
        %1883 = vmatpush.msra.mxu0 0.0
        %1884 = vmatpush.msra.mxu0 0.0
        %1885 = vmatpush.msra.mxu0 0.0
        %1886 = vmatpush.msra.mxu0 0.0
        %1887 = vmatpush.msra.mxu0 0.0
        %1888 = vmatpush.msra.mxu0 0.0
        %1889 = vmatpush.msra.mxu0 0.0
        %1890 = vmatpush.msra.mxu0 0.0
        %1891 = vmatpush.msra.mxu0 0.0
        %1892 = vmatpush.msra.mxu0 %v1850
        %1893 = vmatmul.f32.gmra.mxu0 %v1843
        %v1894 = vpop.f32.mrf.mxu0
        %v1895 = vadd.f32 %v1826, %v1894
        %1896 = vmatmul.f32.gmra.mxu0 %v1846
        %v1897 = vpop.f32.mrf.mxu0
        %v1898 = vadd.f32 %v1831, %v1897
        %1899 = vdwg.mxu0
        %1900 = vmatpush.msra.mxu0 0.0
        %1901 = vmatpush.msra.mxu0 0.0
        %1902 = vmatpush.msra.mxu0 0.0
        %1903 = vmatpush.msra.mxu0 0.0
        %1904 = vmatpush.msra.mxu0 0.0
        %1905 = vmatpush.msra.mxu0 0.0
        %1906 = vmatpush.msra.mxu0 0.0
        %1907 = vmatpush.msra.mxu0 0.0
        %1908 = vmatpush.msra.mxu0 0.0
        %1909 = vmatpush.msra.mxu0 0.0
        %1910 = vmatpush.msra.mxu0 0.0
        %1911 = vmatpush.msra.mxu0 0.0
        %1912 = vmatpush.msra.mxu0 0.0
        %1913 = vmatpush.msra.mxu0 0.0
        %1914 = vmatpush.msra.mxu0 0.0
        %1915 = vmatpush.msra.mxu0 %v1852
        %1916 = vmatmul.f32.gmra.mxu0 %v1843
        %v1917 = vpop.f32.mrf.mxu0
        %v1918 = vadd.f32 %v1826, %v1917
        %1919 = vmatmul.f32.gmra.mxu0 %v1846
        %v1920 = vpop.f32.mrf.mxu0
        %v1921 = vadd.f32 %v1831, %v1920
        %1922 = vdwg.mxu0
        %v1923 = vmul.f32 %v1872, 0.5
        %v1924 = vmul.f32 %v1895, 0.5
        %v1925 = vmul.f32 %v1918, 0.5
        %v1926 = vmul.f32 %v1875, 0.5
        %v1927 = vmul.f32 %v1898, 0.5
        %v1928 = vmul.f32 %v1921, 0.5
        %v1929 = vmul.f32 %v1872, 0.70710677
        %v1930 = vmul.f32 %v1895, 0.70710677
        %v1931 = vmul.f32 %v1918, 0.70710677
        %v1932 = vmul.f32 %v1875, 0.70710677
        %v1933 = vmul.f32 %v1898, 0.70710677
        %v1934 = vmul.f32 %v1921, 0.70710677
        %vm1935 = vcmp.ge.f32.partialorder %v1929, 0.0
        %vm1936 = vcmp.ge.f32.partialorder %v1930, 0.0
        %vm1937 = vcmp.ge.f32.partialorder %v1931, 0.0
        %vm1938 = vcmp.ge.f32.partialorder %v1932, 0.0
        %vm1939 = vcmp.ge.f32.partialorder %v1933, 0.0
        %vm1940 = vcmp.ge.f32.partialorder %v1934, 0.0
        %v1941 = vsel %vm1935, 1.0, -1.0
        %v1942 = vsel %vm1936, 1.0, -1.0
        %v1943 = vsel %vm1937, 1.0, -1.0
        %v1944 = vsel %vm1938, 1.0, -1.0
        %v1945 = vsel %vm1939, 1.0, -1.0
        %v1946 = vsel %vm1940, 1.0, -1.0
        %v1947 = vand.u32 2147483647, %v1929
        %v1948 = vand.u32 2147483647, %v1930
        %v1949 = vand.u32 2147483647, %v1931
        %v1950 = vand.u32 2147483647, %v1932
        %v1951 = vand.u32 2147483647, %v1933
        %v1952 = vand.u32 2147483647, %v1934
        %v1953 = vmul.f32 %v1947, 0.3275911
        %v1954 = vmul.f32 %v1948, 0.3275911
        %v1955 = vmul.f32 %v1949, 0.3275911
        %v1956 = vmul.f32 %v1950, 0.3275911
        %v1957 = vmul.f32 %v1951, 0.3275911
        %v1958 = vmul.f32 %v1952, 0.3275911
        %v1959 = vadd.f32 %v1953, 1.0
        %v1960 = vadd.f32 %v1954, 1.0
        %v1961 = vadd.f32 %v1955, 1.0
        %v1962 = vadd.f32 %v1956, 1.0
        %v1963 = vadd.f32 %v1957, 1.0
        %v1964 = vadd.f32 %v1958, 1.0
        %v1965 = vrcp.pop %v1959
        %v1966 = vmul.f32 %v1959, %v1965
        %v1967 = vsub.f32 1.0, %v1966
        %v1968 = vmul.f32 %v1965, %v1967
        %v1969 = vadd.f32 %v1965, %v1968
        %vm1970 = vweird.f32 %v1959
        %vm1971 = vweird.f32 %v1965
        %vm1972 = vmor %vm1970, %vm1971
        %v1973 = vsel %vm1972, %v1965, %v1969
        %v1974 = vand.u32 2147483647, %v1959
        %vm1975 = vcmp.eq.f32.partialorder %v1974, 8.507059e+37
        %v1976 = vand.u32 %v1959, 2147483648
        %v1977 = vor.u32 1.1754944e-38, %v1976
        %v1978 = vsel %vm1975, %v1977, %v1973
        %v1979 = vmul.f32 1.0, %v1978
        %v1980 = vrcp.pop %v1960
        %v1981 = vmul.f32 %v1960, %v1980
        %v1982 = vsub.f32 1.0, %v1981
        %v1983 = vmul.f32 %v1980, %v1982
        %v1984 = vadd.f32 %v1980, %v1983
        %vm1985 = vweird.f32 %v1960
        %vm1986 = vweird.f32 %v1980
        %vm1987 = vmor %vm1985, %vm1986
        %v1988 = vsel %vm1987, %v1980, %v1984
        %v1989 = vand.u32 2147483647, %v1960
        %vm1990 = vcmp.eq.f32.partialorder %v1989, 8.507059e+37
        %v1991 = vand.u32 %v1960, 2147483648
        %v1992 = vor.u32 1.1754944e-38, %v1991
        %v1993 = vsel %vm1990, %v1992, %v1988
        %v1994 = vmul.f32 1.0, %v1993
        %v1995 = vrcp.pop %v1961
        %v1996 = vmul.f32 %v1961, %v1995
        %v1997 = vsub.f32 1.0, %v1996
        %v1998 = vmul.f32 %v1995, %v1997
        %v1999 = vadd.f32 %v1995, %v1998
        %vm2000 = vweird.f32 %v1961
        %vm2001 = vweird.f32 %v1995
        %vm2002 = vmor %vm2000, %vm2001
        %v2003 = vsel %vm2002, %v1995, %v1999
        %v2004 = vand.u32 2147483647, %v1961
        %vm2005 = vcmp.eq.f32.partialorder %v2004, 8.507059e+37
        %v2006 = vand.u32 %v1961, 2147483648
        %v2007 = vor.u32 1.1754944e-38, %v2006
        %v2008 = vsel %vm2005, %v2007, %v2003
        %v2009 = vmul.f32 1.0, %v2008
        %v2010 = vrcp.pop %v1962
        %v2011 = vmul.f32 %v1962, %v2010
        %v2012 = vsub.f32 1.0, %v2011
        %v2013 = vmul.f32 %v2010, %v2012
        %v2014 = vadd.f32 %v2010, %v2013
        %vm2015 = vweird.f32 %v1962
        %vm2016 = vweird.f32 %v2010
        %vm2017 = vmor %vm2015, %vm2016
        %v2018 = vsel %vm2017, %v2010, %v2014
        %v2019 = vand.u32 2147483647, %v1962
        %vm2020 = vcmp.eq.f32.partialorder %v2019, 8.507059e+37
        %v2021 = vand.u32 %v1962, 2147483648
        %v2022 = vor.u32 1.1754944e-38, %v2021
        %v2023 = vsel %vm2020, %v2022, %v2018
        %v2024 = vmul.f32 1.0, %v2023
        %v2025 = vrcp.pop %v1963
        %v2026 = vmul.f32 %v1963, %v2025
        %v2027 = vsub.f32 1.0, %v2026
        %v2028 = vmul.f32 %v2025, %v2027
        %v2029 = vadd.f32 %v2025, %v2028
        %vm2030 = vweird.f32 %v1963
        %vm2031 = vweird.f32 %v2025
        %vm2032 = vmor %vm2030, %vm2031
        %v2033 = vsel %vm2032, %v2025, %v2029
        %v2034 = vand.u32 2147483647, %v1963
        %vm2035 = vcmp.eq.f32.partialorder %v2034, 8.507059e+37
        %v2036 = vand.u32 %v1963, 2147483648
        %v2037 = vor.u32 1.1754944e-38, %v2036
        %v2038 = vsel %vm2035, %v2037, %v2033
        %v2039 = vmul.f32 1.0, %v2038
        %v2040 = vrcp.pop %v1964
        %v2041 = vmul.f32 %v1964, %v2040
        %v2042 = vsub.f32 1.0, %v2041
        %v2043 = vmul.f32 %v2040, %v2042
        %v2044 = vadd.f32 %v2040, %v2043
        %vm2045 = vweird.f32 %v1964
        %vm2046 = vweird.f32 %v2040
        %vm2047 = vmor %vm2045, %vm2046
        %v2048 = vsel %vm2047, %v2040, %v2044
        %v2049 = vand.u32 2147483647, %v1964
        %vm2050 = vcmp.eq.f32.partialorder %v2049, 8.507059e+37
        %v2051 = vand.u32 %v1964, 2147483648
        %v2052 = vor.u32 1.1754944e-38, %v2051
        %v2053 = vsel %vm2050, %v2052, %v2048
        %v2054 = vmul.f32 1.0, %v2053
        %v2055 = vmul.f32 %v1979, 1.0614054
        %v2056 = vmul.f32 %v1994, 1.0614054
        %v2057 = vmul.f32 %v2009, 1.0614054
        %v2058 = vmul.f32 %v2024, 1.0614054
        %v2059 = vmul.f32 %v2039, 1.0614054
        %v2060 = vmul.f32 %v2054, 1.0614054
        %v2061 = vadd.f32 %v2055, -1.4531521
        %v2062 = vadd.f32 %v2056, -1.4531521
        %v2063 = vadd.f32 %v2057, -1.4531521
        %v2064 = vadd.f32 %v2058, -1.4531521
        %v2065 = vadd.f32 %v2059, -1.4531521
        %v2066 = vadd.f32 %v2060, -1.4531521
        %v2067 = vmul.f32 %v2061, %v1979
        %v2068 = vmul.f32 %v2062, %v1994
        %v2069 = vmul.f32 %v2063, %v2009
        %v2070 = vmul.f32 %v2064, %v2024
        %v2071 = vmul.f32 %v2065, %v2039
        %v2072 = vmul.f32 %v2066, %v2054
        %v2073 = vadd.f32 %v2067, 1.4214138
        %v2074 = vadd.f32 %v2068, 1.4214138
        %v2075 = vadd.f32 %v2069, 1.4214138
        %v2076 = vadd.f32 %v2070, 1.4214138
        %v2077 = vadd.f32 %v2071, 1.4214138
        %v2078 = vadd.f32 %v2072, 1.4214138
        %v2079 = vmul.f32 %v2073, %v1979
        %v2080 = vmul.f32 %v2074, %v1994
        %v2081 = vmul.f32 %v2075, %v2009
        %v2082 = vmul.f32 %v2076, %v2024
        %v2083 = vmul.f32 %v2077, %v2039
        %v2084 = vmul.f32 %v2078, %v2054
        %v2085 = vadd.f32 %v2079, -0.28449672
        %v2086 = vadd.f32 %v2080, -0.28449672
        %v2087 = vadd.f32 %v2081, -0.28449672
        %v2088 = vadd.f32 %v2082, -0.28449672
        %v2089 = vadd.f32 %v2083, -0.28449672
        %v2090 = vadd.f32 %v2084, -0.28449672
        %v2091 = vmul.f32 %v2085, %v1979
        %v2092 = vmul.f32 %v2086, %v1994
        %v2093 = vmul.f32 %v2087, %v2009
        %v2094 = vmul.f32 %v2088, %v2024
        %v2095 = vmul.f32 %v2089, %v2039
        %v2096 = vmul.f32 %v2090, %v2054
        %v2097 = vadd.f32 %v2091, 0.2548296
        %v2098 = vadd.f32 %v2092, 0.2548296
        %v2099 = vadd.f32 %v2093, 0.2548296
        %v2100 = vadd.f32 %v2094, 0.2548296
        %v2101 = vadd.f32 %v2095, 0.2548296
        %v2102 = vadd.f32 %v2096, 0.2548296
        %v2103 = vmul.f32 %v2097, %v1979
        %v2104 = vmul.f32 %v2098, %v1994
        %v2105 = vmul.f32 %v2099, %v2009
        %v2106 = vmul.f32 %v2100, %v2024
        %v2107 = vmul.f32 %v2101, %v2039
        %v2108 = vmul.f32 %v2102, %v2054
        %v2109 = vsub.f32 0.0, %v1947
        %v2110 = vsub.f32 0.0, %v1948
        %v2111 = vsub.f32 0.0, %v1949
        %v2112 = vsub.f32 0.0, %v1950
        %v2113 = vsub.f32 0.0, %v1951
        %v2114 = vsub.f32 0.0, %v1952
        %v2115 = vmul.f32 %v2109, %v1947
        %v2116 = vmul.f32 %v2110, %v1948
        %v2117 = vmul.f32 %v2111, %v1949
        %v2118 = vmul.f32 %v2112, %v1950
        %v2119 = vmul.f32 %v2113, %v1951
        %v2120 = vmul.f32 %v2114, %v1952
        %v2121 = vmul.f32 %v2115, 1.442695
        %v2122 = vpow.pop %v2121
        %v2123 = vmul.f32 %v2116, 1.442695
        %v2124 = vpow.pop %v2123
        %v2125 = vmul.f32 %v2117, 1.442695
        %v2126 = vpow.pop %v2125
        %v2127 = vmul.f32 %v2118, 1.442695
        %v2128 = vpow.pop %v2127
        %v2129 = vmul.f32 %v2119, 1.442695
        %v2130 = vpow.pop %v2129
        %v2131 = vmul.f32 %v2120, 1.442695
        %v2132 = vpow.pop %v2131
        %v2133 = vmul.f32 %v2103, %v2122
        %v2134 = vmul.f32 %v2104, %v2124
        %v2135 = vmul.f32 %v2105, %v2126
        %v2136 = vmul.f32 %v2106, %v2128
        %v2137 = vmul.f32 %v2107, %v2130
        %v2138 = vmul.f32 %v2108, %v2132
        %v2139 = vsub.f32 1.0, %v2133
        %v2140 = vsub.f32 1.0, %v2134
        %v2141 = vsub.f32 1.0, %v2135
        %v2142 = vsub.f32 1.0, %v2136
        %v2143 = vsub.f32 1.0, %v2137
        %v2144 = vsub.f32 1.0, %v2138
        %v2145 = vmul.f32 %v1941, %v2139
        %v2146 = vmul.f32 %v1942, %v2140
        %v2147 = vmul.f32 %v1943, %v2141
        %v2148 = vmul.f32 %v1944, %v2142
        %v2149 = vmul.f32 %v1945, %v2143
        %v2150 = vmul.f32 %v1946, %v2144
        %v2151 = vadd.f32 %v2145, 1.0
        %v2152 = vadd.f32 %v2146, 1.0
        %v2153 = vadd.f32 %v2147, 1.0
        %v2154 = vadd.f32 %v2148, 1.0
        %v2155 = vadd.f32 %v2149, 1.0
        %v2156 = vadd.f32 %v2150, 1.0
        %v2157 = vmul.f32 %v1923, %v2151
        %v2158 = vmul.f32 %v1924, %v2152
        %v2159 = vmul.f32 %v1925, %v2153
        %v2160 = vmul.f32 %v1926, %v2154
        %v2161 = vmul.f32 %v1927, %v2155
        %v2162 = vmul.f32 %v1928, %v2156
        %v2163 = vld [vmem:[%s12] sm:$0x7]
        %v2164 = vmul.f32 %v2157, %v2157
        %v2165 = vmul.f32 %v2158, %v2158
        %v2166 = vmul.f32 %v2159, %v2159
        %v2167 = vmul.f32 %v2160, %v2160
        %v2168 = vmul.f32 %v2161, %v2161
        %v2169 = vmul.f32 %v2162, %v2162
        %v2171 = vperm.slane %v2163, 0
        %v2172 = vperm.slane %v2163, 1
        %v2173 = vperm.slane %v2163, 2
        %v2177 = vmul.f32 %v2164, %v2171
        %v2178 = vmul.f32 %v2165, %v2172
        %v2179 = vmul.f32 %v2166, %v2173
        %v2180 = vmul.f32 %v2167, %v2171
        %v2181 = vmul.f32 %v2168, %v2172
        %v2182 = vmul.f32 %v2169, %v2173
        %v2183 = vadd.f32 %v2177, %v2178
        %vm2184 = vcmask 785408
        %v2185 = vsel %vm2184, %v2179, 0.0
        %v2186 = vadd.f32 %v2183, %v2185
        %2187 = vadd.xlane.f32.xlu0 %v2186
        %v2188 = vpop.xlane.xlu0 %2187
        %v2189 = vadd.f32 %v2180, %v2181
        %v2190 = vsel %vm2184, %v2182, 0.0
        %v2191 = vadd.f32 %v2189, %v2190
        %2192 = vadd.xlane.f32.xlu0 %v2191
        %v2193 = vpop.xlane.xlu0 %2192
        %v2194 = vrsqrt.pop %v2188
        %v2195 = vmul.f32 %v2194, %v2188
        %v2196 = vmul.f32 %v2195, %v2194
        %v2197 = vmul.f32 0.5, %v2196
        %v2198 = vsub.f32 1.5, %v2197
        %v2199 = vmul.f32 %v2194, %v2198
        %v2200 = vmul.f32 %v2188, %v2199
        %vm2201 = vcmp.eq.f32.partialorder %v2188, inf
        %v2202 = vsel %vm2201, %v2188, %v2200
        %vm2203 = vcmp.eq.f32.partialorder %v2188, 0.0
        %v2204 = vand.u32 %v2188, 2147483648
        %v2205 = vsel %vm2203, %v2204, %v2202
        %v2206 = vrsqrt.pop %v2193
        %v2207 = vmul.f32 %v2206, %v2193
        %v2208 = vmul.f32 %v2207, %v2206
        %v2209 = vmul.f32 0.5, %v2208
        %v2210 = vsub.f32 1.5, %v2209
        %v2211 = vmul.f32 %v2206, %v2210
        %v2212 = vmul.f32 %v2193, %v2211
        %vm2213 = vcmp.eq.f32.partialorder %v2193, inf
        %v2214 = vsel %vm2213, %v2193, %v2212
        %vm2215 = vcmp.eq.f32.partialorder %v2193, 0.0
        %v2216 = vand.u32 %v2193, 2147483648
        %v2217 = vsel %vm2215, %v2216, %v2214
        %v2218 = vadd.f32 %v2205, %v2217
        %v2219 = vrot.slane %v2218, 4
        %v2220 = vadd.f32 %v2218, %v2219
        %v2221 = vrot.slane %v2220, 2
        %v2222 = vadd.f32 %v2220, %v2221
        %v2223 = vrot.slane %v2222, 1
        %v2224 = vadd.f32 %v2222, %v2223
        %v2225 = vrcp.pop 16.0
        %v2226 = vmul.f32 16.0, %v2225
        %v2227 = vsub.f32 1.0, %v2226
        %v2228 = vmul.f32 %v2225, %v2227
        %v2229 = vadd.f32 %v2225, %v2228
        %vm2230 = vweird.f32 %v2225
        %v2231 = vsel %vm2230, %v2225, %v2229
        %v2232 = vmul.f32 %v2224, %v2231
        %v2233 = vadd.f32 %v2232, 1e-06
        %v2234 = vrcp.pop %v2233
        %v2235 = vmul.f32 %v2233, %v2234
        %v2236 = vsub.f32 1.0, %v2235
        %v2237 = vmul.f32 %v2234, %v2236
        %v2238 = vadd.f32 %v2234, %v2237
        %vm2239 = vweird.f32 %v2233
        %vm2240 = vweird.f32 %v2234
        %vm2241 = vmor %vm2239, %vm2240
        %v2242 = vsel %vm2241, %v2234, %v2238
        %v2243 = vand.u32 2147483647, %v2233
        %vm2244 = vcmp.eq.f32.partialorder %v2243, 8.507059e+37
        %v2245 = vand.u32 %v2233, 2147483648
        %v2246 = vor.u32 1.1754944e-38, %v2245
        %v2247 = vsel %vm2244, %v2246, %v2242
        %v2248 = vmul.f32 %v2205, %v2247
        %v2249 = vmul.f32 %v2217, %v2247
        %v2250 = vld [vmem:[%s7] sm:$0xff]
        %v2251 = vld [vmem:[%s7 + $0x8] sm:$0xff]
        %v2252 = vmul.f32 %v2157, %v2248
        %v2253 = vmul.f32 %v2158, %v2248
        %v2254 = vmul.f32 %v2159, %v2248
        %v2255 = vmul.f32 %v2160, %v2249
        %v2256 = vmul.f32 %v2161, %v2249
        %v2257 = vmul.f32 %v2162, %v2249
        %2259 = vset.pattern.permute.xlu0 0
        %2260 = vperm.xlu0 %2259, %v2250
        %v2261 = vpop.permute.xlu0 %2260
        %2264 = vset.pattern.permute.xlu0 0
        %2265 = vperm.xlu0 %2264, %v2251
        %v2266 = vpop.permute.xlu0 %2265
        %v2268 = vmul.f32 %v2261, %v2252
        %v2269 = vmul.f32 %v2261, %v2253
        %v2270 = vmul.f32 %v2261, %v2254
        %v2271 = vmul.f32 %v2266, %v2255
        %v2272 = vmul.f32 %v2266, %v2256
        %v2273 = vmul.f32 %v2266, %v2257
        %v2274 = vld [vmem:[%s8] sm:$0xff]
        %v2275 = vld [vmem:[%s8 + $0x8] sm:$0xff]
        %2277 = vset.pattern.permute.xlu0 0
        %2278 = vperm.xlu0 %2277, %v2274
        %v2279 = vpop.permute.xlu0 %2278
        %2282 = vset.pattern.permute.xlu0 0
        %2283 = vperm.xlu0 %2282, %v2275
        %v2284 = vpop.permute.xlu0 %2283
        %v2286 = vadd.f32 %v2268, %v2279
        %v2287 = vadd.f32 %v2269, %v2279
        %v2288 = vadd.f32 %v2270, %v2279
        %v2289 = vadd.f32 %v2271, %v2284
        %v2290 = vadd.f32 %v2272, %v2284
        %v2291 = vadd.f32 %v2273, %v2284
        %v2292 = vadd.f32 %v2286, %v2157
        %v2293 = vadd.f32 %v2287, %v2158
        %v2294 = vadd.f32 %v2288, %v2159
        %v2295 = vadd.f32 %v2289, %v2160
        %v2296 = vadd.f32 %v2290, %v2161
        %v2297 = vadd.f32 %v2291, %v2162
        %v2298 = vld [vmem:[%s9] sm:$0xff]
        %v2299 = vld [vmem:[%s10] sm:$0xff]
        %2300 = vst [vmem:[#allocation1] ss:$2 sm:$0xff] %v439
        %s2301 = scalar_lea.vmem [#allocation1], 16
        %2302 = vst [vmem:[%s2301] ss:$2 sm:$0xff] %v440
        %v2303 = vld.sshfl [vmem:[#allocation1] sm:$0xff pattern:$0x75316420]
        %v2304 = vld.sshfl [vmem:[#allocation1 + $0x8] sm:$0xff pattern:$0x75316420]
        %v2305 = vld.sshfl [vmem:[#allocation1 + $0x10] sm:$0xff pattern:$0x75316420]
        %v2306 = vld.sshfl [vmem:[#allocation1 + $0x18] sm:$0xff pattern:$0x75316420]
        %2307 = vrot.lane.b32.xlu0 %v2303, 59
        %v2308 = vpop.permute.xlu0 %2307
        %2309 = vrot.lane.b32.xlu0 %v2304, 59
        %v2310 = vpop.permute.xlu0 %2309
        %2311 = vrot.lane.b32.xlu0 %v2305, 59
        %v2312 = vpop.permute.xlu0 %2311
        %2313 = vrot.lane.b32.xlu0 %v2306, 59
        %v2314 = vpop.permute.xlu0 %2313
        %v2315 = vsel %vm1058, %v2308, %v2310
        %v2316 = vsel %vm1058, %v2310, %v2312
        %v2317 = vsel %vm1058, %v2312, %v2314
        %v2319 = vsel %vm1841, %v2299, 0
        %v2321 = vsel %vm471, %v2315, 0
        %v2323 = vsel %vm471, %v2316, 0
        %v2325 = vsel %vm471, %v2317, 0
        %2327 = vmatpush.msra.mxu0 0.0
        %2328 = vmatpush.msra.mxu0 0.0
        %2329 = vmatpush.msra.mxu0 0.0
        %2330 = vmatpush.msra.mxu0 0.0
        %2331 = vmatpush.msra.mxu0 0.0
        %2332 = vmatpush.msra.mxu0 0.0
        %2333 = vmatpush.msra.mxu0 0.0
        %2334 = vmatpush.msra.mxu0 0.0
        %2335 = vmatpush.msra.mxu0 0.0
        %2336 = vmatpush.msra.mxu0 0.0
        %2337 = vmatpush.msra.mxu0 0.0
        %2338 = vmatpush.msra.mxu0 0.0
        %2339 = vmatpush.msra.mxu0 0.0
        %2340 = vmatpush.msra.mxu0 0.0
        %2341 = vmatpush.msra.mxu0 0.0
        %2342 = vmatpush.msra.mxu0 %v2321
        %2343 = vmatmul.f32.gmra.mxu0 %v2319
        %v2344 = vpop.f32.mrf.mxu0
        %v2345 = vadd.f32 0.0, %v2344
        %2346 = vdwg.mxu0
        %2347 = vmatpush.msra.mxu0 0.0
        %2348 = vmatpush.msra.mxu0 0.0
        %2349 = vmatpush.msra.mxu0 0.0
        %2350 = vmatpush.msra.mxu0 0.0
        %2351 = vmatpush.msra.mxu0 0.0
        %2352 = vmatpush.msra.mxu0 0.0
        %2353 = vmatpush.msra.mxu0 0.0
        %2354 = vmatpush.msra.mxu0 0.0
        %2355 = vmatpush.msra.mxu0 0.0
        %2356 = vmatpush.msra.mxu0 0.0
        %2357 = vmatpush.msra.mxu0 0.0
        %2358 = vmatpush.msra.mxu0 0.0
        %2359 = vmatpush.msra.mxu0 0.0
        %2360 = vmatpush.msra.mxu0 0.0
        %2361 = vmatpush.msra.mxu0 0.0
        %2362 = vmatpush.msra.mxu0 %v2323
        %2363 = vmatmul.f32.gmra.mxu0 %v2319
        %v2364 = vpop.f32.mrf.mxu0
        %v2365 = vadd.f32 0.0, %v2364
        %2366 = vdwg.mxu0
        %2367 = vmatpush.msra.mxu0 0.0
        %2368 = vmatpush.msra.mxu0 0.0
        %2369 = vmatpush.msra.mxu0 0.0
        %2370 = vmatpush.msra.mxu0 0.0
        %2371 = vmatpush.msra.mxu0 0.0
        %2372 = vmatpush.msra.mxu0 0.0
        %2373 = vmatpush.msra.mxu0 0.0
        %2374 = vmatpush.msra.mxu0 0.0
        %2375 = vmatpush.msra.mxu0 0.0
        %2376 = vmatpush.msra.mxu0 0.0
        %2377 = vmatpush.msra.mxu0 0.0
        %2378 = vmatpush.msra.mxu0 0.0
        %2379 = vmatpush.msra.mxu0 0.0
        %2380 = vmatpush.msra.mxu0 0.0
        %2381 = vmatpush.msra.mxu0 0.0
        %2382 = vmatpush.msra.mxu0 %v2325
        %2383 = vmatmul.f32.gmra.mxu0 %v2319
        %v2384 = vpop.f32.mrf.mxu0
        %v2385 = vadd.f32 0.0, %v2384
        %2386 = vdwg.mxu0
        %v2388 = vsel %vm1396, %v2298, 0
        %2390 = vmatpush.msra.mxu0 0.0
        %2391 = vmatpush.msra.mxu0 0.0
        %2392 = vmatpush.msra.mxu0 0.0
        %2393 = vmatpush.msra.mxu0 0.0
        %2394 = vmatpush.msra.mxu0 0.0
        %2395 = vmatpush.msra.mxu0 0.0
        %2396 = vmatpush.msra.mxu0 0.0
        %2397 = vmatpush.msra.mxu0 0.0
        %2398 = vmatpush.msra.mxu0 0.0
        %2399 = vmatpush.msra.mxu0 0.0
        %2400 = vmatpush.msra.mxu0 0.0
        %2401 = vmatpush.msra.mxu0 0.0
        %2402 = vmatpush.msra.mxu0 0.0
        %2403 = vmatpush.msra.mxu0 0.0
        %2404 = vmatpush.msra.mxu0 %v2295
        %2405 = vmatpush.msra.mxu0 %v2292
        %2406 = vmatmul.f32.gmra.mxu0 %v2388
        %v2407 = vpop.f32.mrf.mxu0
        %v2408 = vadd.f32 %v2345, %v2407
        %2409 = vdwg.mxu0
        %2410 = vmatpush.msra.mxu0 0.0
        %2411 = vmatpush.msra.mxu0 0.0
        %2412 = vmatpush.msra.mxu0 0.0
        %2413 = vmatpush.msra.mxu0 0.0
        %2414 = vmatpush.msra.mxu0 0.0
        %2415 = vmatpush.msra.mxu0 0.0
        %2416 = vmatpush.msra.mxu0 0.0
        %2417 = vmatpush.msra.mxu0 0.0
        %2418 = vmatpush.msra.mxu0 0.0
        %2419 = vmatpush.msra.mxu0 0.0
        %2420 = vmatpush.msra.mxu0 0.0
        %2421 = vmatpush.msra.mxu0 0.0
        %2422 = vmatpush.msra.mxu0 0.0
        %2423 = vmatpush.msra.mxu0 0.0
        %2424 = vmatpush.msra.mxu0 %v2296
        %2425 = vmatpush.msra.mxu0 %v2293
        %2426 = vmatmul.f32.gmra.mxu0 %v2388
        %v2427 = vpop.f32.mrf.mxu0
        %v2428 = vadd.f32 %v2365, %v2427
        %2429 = vdwg.mxu0
        %2430 = vmatpush.msra.mxu0 0.0
        %2431 = vmatpush.msra.mxu0 0.0
        %2432 = vmatpush.msra.mxu0 0.0
        %2433 = vmatpush.msra.mxu0 0.0
        %2434 = vmatpush.msra.mxu0 0.0
        %2435 = vmatpush.msra.mxu0 0.0
        %2436 = vmatpush.msra.mxu0 0.0
        %2437 = vmatpush.msra.mxu0 0.0
        %2438 = vmatpush.msra.mxu0 0.0
        %2439 = vmatpush.msra.mxu0 0.0
        %2440 = vmatpush.msra.mxu0 0.0
        %2441 = vmatpush.msra.mxu0 0.0
        %2442 = vmatpush.msra.mxu0 0.0
        %2443 = vmatpush.msra.mxu0 0.0
        %2444 = vmatpush.msra.mxu0 %v2297
        %2445 = vmatpush.msra.mxu0 %v2294
        %2446 = vmatmul.f32.gmra.mxu0 %v2388
        %v2447 = vpop.f32.mrf.mxu0
        %v2448 = vadd.f32 %v2385, %v2447
        %2449 = vdwg.mxu0
        %v2450 = vld [vmem:[%s11] sm:$0xff]
        %2452 = vset.pattern.permute.xlu0 0
        %2453 = vperm.xlu0 %2452, %v2450
        %v2454 = vpop.permute.xlu0 %2453
        %v2456 = vadd.f32 %v2408, %v2454
        %v2457 = vadd.f32 %v2428, %v2454
        %v2458 = vadd.f32 %v2448, %v2454
        %2459 = vst [vmem:[%s433] sm:$0xff] %v2456
        %2460 = vst [vmem:[%s433 + $0x8] sm:$0xff] %v2457
        %2461 = vst.msk [vmem:[%s433 + $0x10] sm:$0xff] %vm2184, %v2458
        %s2462 = sand.u32 %s313, 1
        %s2463 = scalar_lea.sflag [#allocation3], %s2462
        %s2464 = sand.u32 %s313, 1
        %s2465 = smul.addr %s2464, 24
        %s2466 = scalar_lea.vmem [#allocation2], %s2465
        // Predicated region
        $region73: #{tpu_custom_call.1} parent=71 // pred_check
          %p2467 = pneg %p323
        $region74: #{tpu_custom_call.1} parent=71 // pred_check_branch
          %2469 = sbr.rel (%p2467) target = $region76
        $region75: #{tpu_custom_call.1} parent=71 // pred_region
          %2471 = vsyncadd %s2463, 0
          %s2472 = smul.addr %s27, 3
          %s2473 = smul.addr %s2472, 8
          %s2474 = scalar_lea.hbm %s13, %s2473
          %s2476 = sshll.u32 %s2466, 4
          %s2477 = int_to_ptr.vmem [resolvable:$true] %s2476
          %s2478 = sshll.u32 %s2474, 4
          %s2479 = int_to_ptr.hbm [resolvable:$true] %s2478
          %2481 = dma.vmem_to_hbm [thread:$0]  %s2477, 384, %s2479, %s2463
        $region76: #{tpu_custom_call.1} parent=71 // pred_fallthru
          _
      $region72: #{tpu_custom_call.1} parent=5 // pred_fallthru
        _
      %p2482 = scmp.le.s32.totalorder 2, %s22
      // Predicated region
      $region77: #{tpu_custom_call.1} parent=5 // pred_check
        %p2483 = pneg %p2482
      $region78: #{tpu_custom_call.1} parent=5 // pred_check_branch
        %2485 = sbr.rel (%p2483) target = $region80
      $region79: #{tpu_custom_call.1} parent=5 // pred_region
        %s2486 = ssub.s32 %s22, 2
        // Predicated region
        $region81: #{tpu_custom_call.1} parent=79 // pred_check
          %p2487 = pneg %p329
        $region82: #{tpu_custom_call.1} parent=79 // pred_check_branch
          %2489 = sbr.rel (%p2487) target = $region84
        $region83: #{tpu_custom_call.1} parent=79 // pred_region
          %s2490 = sand.u32 %s314, 1
          %s2491 = scalar_lea.sflag [#allocation3], %s2490
          %s2492 = sand.u32 %s314, 1
          %s2493 = smul.addr %s2492, 24
          %s2494 = scalar_lea.vmem [#allocation2], %s2493
          %2496 = dma.done %s2491, 384
        $region84: #{tpu_custom_call.1} parent=79 // pred_fallthru
          _
      $region80: #{tpu_custom_call.1} parent=5 // pred_fallthru
        _
    $region6: #{tpu_custom_call.1} parent=1 // loop_footer
      %s26 = sadd.s32 1, %s22
    $region7: #{tpu_custom_call.1} parent=1 // loop_footer_branch
      %21 = sbr.rel target = $region3
    $region8: #{tpu_custom_call.1} parent=1 // loop_exit
      _
    %2497 = vsyncpa [#allocation3], 1
    %s2498 = scalar_lea.sflag [#allocation3], 1
    %2499 = vsyncpa %s2498, 1

</llo_original>
